<compile_context>
chip_gen: v5e
topology: v5e:2x2
jax: 0.10.0
libtpu: 0.0.40
codegen_flags: <defaults>
</compile_context>

<pallas_src>
import functools

import jax
import jax.numpy as jnp
from jax import lax
from jax.experimental import pallas as pl
from jax.experimental.pallas import tpu as pltpu

HEAD_DIM = 16
LN_EPS = 1e-5
SM_SCALE = 1.0 / (HEAD_DIM ** 0.5)      # folded into w_q / b_q in the wrapper


def _vmem_limit_bytes():
    """3/4 of physical VMEM: ~48 MiB on v7x, ~96 MiB on v5e/v6e."""
    cap = 64 * 1024 * 1024
    try:
        cap = int(getattr(pltpu.get_tpu_info(), "vmem_capacity_bytes", cap) or cap)
    except Exception:
        pass
    return min(cap * 3 // 4, 112 * 1024 * 1024)


def _layer_norm(x, gamma, beta):
    mean = jnp.mean(x, axis=-1, keepdims=True)
    xc = x - mean
    var = jnp.mean(xc * xc, axis=-1, keepdims=True)
    return xc * lax.rsqrt(var + LN_EPS) * gamma + beta


# --------------------------------------------------------------------------- #
# Kernel A: LayerNorm + fused K/V projection.  K emitted pre-transposed.      #
# --------------------------------------------------------------------------- #
def _ln_kv_kernel(x_ref, g_ref, bta_ref, wkv_ref, bkv_ref, kt_ref, v_ref):
    C = x_ref.shape[-1]
    x = x_ref[0]                                            # (TN, C) f32
    xn = _layer_norm(x, g_ref[0], bta_ref[0]).astype(jnp.bfloat16)
    # One (TN,C) x (C,2C) MXU matmul for K and V (bf16 operands, f32 accumulate).
    kv = jnp.dot(xn, wkv_ref[...], preferred_element_type=jnp.float32) + bkv_ref[0]
    v_ref[0] = kv[:, C:].astype(jnp.bfloat16)               # V token-major (TN, C)
    # Single f32 transpose per tile -> K^T stored (C, TN): Kernel B then gets a
    # clean 16-sublane per-head slice and a natural (TQ,16)x(16,N) matmul.
    kt_ref[0] = jnp.transpose(kv[:, :C]).astype(jnp.bfloat16)


# --------------------------------------------------------------------------- #
# Kernel B: LN + Q proj + per-head attention + fused out-proj + residual.     #
# --------------------------------------------------------------------------- #
def _attn_kernel(x_ref, g_ref, bta_ref, wq_ref, bq_ref, kt_ref, v_ref,
                 wo_ref, bo_ref, ls_ref, o_ref, *, n_heads):
    x = x_ref[0]                                            # (TQ, C) f32 residual tile
    xn = _layer_norm(x, g_ref[0], bta_ref[0]).astype(jnp.bfloat16)
    # Q projection recomputed here (w_q/b_q pre-scaled by 1/sqrt(head_dim)).
    q = (jnp.dot(xn, wq_ref[...], preferred_element_type=jnp.float32)
         + bq_ref[0]).astype(jnp.bfloat16)                  # (TQ, C)
    kt = kt_ref[0]                                          # (C, N) bf16
    v = v_ref[0]                                            # (N, C) bf16

    # TODO(synk): for very large n_heads switch this static unroll to head groups,
    #             and for very large N stream K/V flash-style (online softmax).
    outs = []
    for h in range(n_heads):
        sl = slice(h * HEAD_DIM, (h + 1) * HEAD_DIM)
        # (TQ,16) @ (16,N) -> (TQ,N) f32 scores; stable softmax in f32.
        s = jnp.dot(q[:, sl], kt[sl, :], preferred_element_type=jnp.float32)
        s = s - jnp.max(s, axis=-1, keepdims=True)
        p = jnp.exp(s)
        p = p * pl.reciprocal(jnp.sum(p, axis=-1, keepdims=True), approx=True)
        outs.append(jnp.dot(p.astype(jnp.bfloat16), v[:, sl],
                            preferred_element_type=jnp.float32))   # (TQ, 16) f32
    o = jnp.concatenate(outs, axis=-1)                      # (TQ, C) f32, lane-dense

    # Fused output projection: ONE K=C matmul; residual + layerscale stay f32.
    y = jnp.dot(o.astype(jnp.bfloat16), wo_ref[...],
                preferred_element_type=jnp.float32) + bo_ref[0]
    o_ref[0] = x + ls_ref[0, 0] * y


# --------------------------------------------------------------------------- #
# Wrappers                                                                    #
# --------------------------------------------------------------------------- #
def _pick_tile(n, cap, mult):
    """Largest multiple of `mult` <= cap dividing n; n itself (full dim) otherwise."""
    if n <= cap:
        return n
    best = None
    for t in range(mult, cap + 1, mult):
        if n % t == 0:
            best = t
    return best if best is not None else n


def residual_attn_tokens(x_tok, params, *, tn_cap=512, tq_cap=512):
    """x_tok: (B, N, C) float32 tokens-major. Returns (B, N, C) float32."""
    B, N, C = x_tok.shape
    n_heads = C // HEAD_DIM
    assert n_heads * HEAD_DIM == C, "channels must be a multiple of head_dim=16"
    f32, bf16 = jnp.float32, jnp.bfloat16

    wqkv = params["w_qkv"]
    bqkv = params["b_qkv"].astype(f32)
    # bf16 weights in HBM; softmax scale folded into the Q projection (free).
    wq = (wqkv[:, :C] * SM_SCALE).astype(bf16)
    bq = (bqkv[:C] * SM_SCALE).reshape(1, C)
    wkv = wqkv[:, C:].astype(bf16)                          # (C, 2C) = [Wk | Wv]
    bkv = bqkv[C:].reshape(1, 2 * C)
    wo = params["w_o"].astype(bf16)
    bo = params["b_o"].reshape(1, C).astype(f32)
    gamma = params["gamma"].reshape(1, C).astype(f32)
    beta = params["beta"].reshape(1, C).astype(f32)
    ls = params["layerscale"].reshape(1, 1).astype(f32)     # scalar -> SMEM

    # Bound the per-head (TQ, N) f32 score slab (~<= 1 MiB) and, when B == 1,
    # force >= 2 grid steps so both v7x TensorCores get work.
    tq_cap = min(tq_cap, max(64, (1 << 20) // (4 * N)))
    tn_eff, tq_eff = tn_cap, tq_cap
    if B == 1:
        tq_eff = min(tq_eff, max(HEAD_DIM, N // 2))
        tn_eff = min(tn_eff, max(128, N // 2))
    TQ = _pick_tile(N, tq_eff, 16)      # bf16 sublane packing -> multiples of 16
    TN = _pick_tile(N, tn_eff, 128)     # K^T block minor dim -> multiples of 128

    cparams = pltpu.CompilerParams(
        dimension_semantics=("parallel", "parallel"),
        vmem_limit_bytes=_vmem_limit_bytes())

    # ---- Kernel A: LayerNorm + fused K/V projection ------------------------
    kt_all, v_all = pl.pallas_call(
        _ln_kv_kernel,
        out_shape=(jax.ShapeDtypeStruct((B, C, N), bf16),    # K^T
                   jax.ShapeDtypeStruct((B, N, C), bf16)),   # V
        grid_spec=pltpu.PrefetchScalarGridSpec(
            num_scalar_prefetch=0,
            grid=(B, N // TN),
            in_specs=[
                pl.BlockSpec((1, TN, C), lambda b, t: (b, t, 0)),   # x tokens
                pl.BlockSpec((1, C), lambda b, t: (0, 0)),          # gamma
                pl.BlockSpec((1, C), lambda b, t: (0, 0)),          # beta
                pl.BlockSpec((C, 2 * C), lambda b, t: (0, 0)),      # [Wk | Wv]
                pl.BlockSpec((1, 2 * C), lambda b, t: (0, 0)),      # [bk | bv]
            ],
            out_specs=(pl.BlockSpec((1, C, TN), lambda b, t: (b, 0, t)),
                       pl.BlockSpec((1, TN, C), lambda b, t: (b, t, 0))),
        ),
        compiler_params=cparams,
    )(x_tok, gamma, beta, wkv, bkv)

    # ---- Kernel B: LN + Q + attention + fused out-proj + residual ----------
    kernel_b = functools.partial(_attn_kernel, n_heads=n_heads)
    out_tok = pl.pallas_call(
        kernel_b,
        out_shape=jax.ShapeDtypeStruct((B, N, C), f32),
        grid_spec=pltpu.PrefetchScalarGridSpec(
            num_scalar_prefetch=0,
            grid=(B, N // TQ),
            in_specs=[
                pl.BlockSpec((1, TQ, C), lambda b, i: (b, i, 0)),   # residual x tile
                pl.BlockSpec((1, C), lambda b, i: (0, 0)),          # gamma
                pl.BlockSpec((1, C), lambda b, i: (0, 0)),          # beta
                pl.BlockSpec((C, C), lambda b, i: (0, 0)),          # w_q (pre-scaled)
                pl.BlockSpec((1, C), lambda b, i: (0, 0)),          # b_q (pre-scaled)
                pl.BlockSpec((1, C, N), lambda b, i: (b, 0, 0)),    # full K^T per batch
                pl.BlockSpec((1, N, C), lambda b, i: (b, 0, 0)),    # full V per batch
                pl.BlockSpec((C, C), lambda b, i: (0, 0)),          # w_o
                pl.BlockSpec((1, C), lambda b, i: (0, 0)),          # b_o
                pl.BlockSpec(memory_space=pltpu.MemorySpace.SMEM),  # layerscale scalar
            ],
            out_specs=pl.BlockSpec((1, TQ, C), lambda b, i: (b, i, 0)),
        ),
        compiler_params=cparams,
    )(x_tok, gamma, beta, wq, bq, kt_all, v_all, wo, bo, ls)
    return out_tok


def residual_attn(x_nchw, params):
    """x_nchw: (B, C, H, W) float32. Returns (B, C, H, W)."""
    B, C, H, W = x_nchw.shape
    # TODO(synk): keep activations NHWC in the surrounding model (or fold these
    #             layout changes into the kernels) so these two full-tensor
    #             transposes — extra HBM passes on a mem-bound op — vanish.
    x_tok = jnp.transpose(x_nchw, (0, 2, 3, 1)).reshape(B, H * W, C)
    out_tok = residual_attn_tokens(x_tok, params)
    return jnp.transpose(out_tok.reshape(B, H, W, C), (0, 3, 1, 2))


# --------------------------------------------------------------------------- #
# Plain-JAX f32 reference + params                                            #
# --------------------------------------------------------------------------- #
def residual_attn_ref(x_nchw, params):
    B, C, H, W = x_nchw.shape
    n_heads = C // HEAD_DIM
    xt = jnp.transpose(x_nchw, (0, 2, 3, 1)).reshape(B, H * W, C)
    mean = xt.mean(-1, keepdims=True)
    var = ((xt - mean) ** 2).mean(-1, keepdims=True)
    xn = (xt - mean) / jnp.sqrt(var + LN_EPS) * params["gamma"] + params["beta"]
    qkv = xn @ params["w_qkv"] + params["b_qkv"]
    q, k, v = jnp.split(qkv, 3, axis=-1)
    split = lambda t: t.reshape(B, -1, n_heads, HEAD_DIM).transpose(0, 2, 1, 3)
    qh, kh, vh = split(q), split(k), split(v)
    s = jnp.einsum("bhnd,bhmd->bhnm", qh, kh) * SM_SCALE
    p = jax.nn.softmax(s, axis=-1)
    o = jnp.einsum("bhnm,bhmd->bhnd", p, vh).transpose(0, 2, 1, 3).reshape(B, -1, C)
    y = o @ params["w_o"] + params["b_o"]
    out = xt + params["layerscale"] * y
    return jnp.transpose(out.reshape(B, H, W, C), (0, 3, 1, 2))


def init_params(key, ch):
    ks = jax.random.split(key, 6)
    return {
        "gamma": 1.0 + 0.05 * jax.random.normal(ks[0], (ch,), jnp.float32),
        "beta": 0.05 * jax.random.normal(ks[1], (ch,), jnp.float32),
        "w_qkv": 0.05 * jax.random.normal(ks[2], (ch, 3 * ch), jnp.float32),
        "b_qkv": 0.05 * jax.random.normal(ks[3], (3 * ch,), jnp.float32),
        "w_o": 0.05 * jax.random.normal(ks[4], (ch, ch), jnp.float32),
        "b_o": 0.05 * jax.random.normal(ks[5], (ch,), jnp.float32),
        "layerscale": jnp.array(1e-6, jnp.float32),   # module default init
    }


if __name__ == "__main__":
    key = jax.random.PRNGKey(0)
    kx, kp = jax.random.split(key)

    B, CH, H, W = 2, 128, 16, 16        # ch=128 -> n_heads=8, head_dim=16, seq=256
    x = jax.random.normal(kx, (B, CH, H, W), jnp.float32)
    params = init_params(kp, CH)

    # 1) Module-default layerscale (1e-6): output ~ residual, tight tolerance.
    out = jax.block_until_ready(residual_attn(x, params))
    ref = residual_attn_ref(x, params)
    assert out.shape == x.shape
    assert jnp.allclose(out, ref, rtol=1e-4, atol=1e-5), (
        f"ls=1e-6: max abs err {jnp.max(jnp.abs(out - ref))}")

    # 2) layerscale = 1.0 so the attention branch is actually exercised
    #    (bf16 MXU operands -> compare with looser tolerance).
    params2 = dict(params, layerscale=jnp.array(1.0, jnp.float32))
    out2 = jax.block_until_ready(residual_attn(x, params2))
    ref2 = residual_attn_ref(x, params2)
    assert jnp.allclose(out2, ref2, rtol=2e-2, atol=1e-2), (
        f"ls=1.0: max abs err {jnp.max(jnp.abs(out2 - ref2))}")

    print("KERNEL_OK")
</pallas_src>

<mosaic_0001>
module attributes {stable_mosaic.version = 11 : i64} {
  func.func @_ln_kv_kernel(%arg0: i32, %arg1: i32, %arg2: memref<1x256x128xf32, #tpu.memory_space<vmem>>, %arg3: memref<1x128xf32, #tpu.memory_space<vmem>>, %arg4: memref<1x128xf32, #tpu.memory_space<vmem>>, %arg5: memref<128x256xbf16, #tpu.memory_space<vmem>>, %arg6: memref<1x256xf32, #tpu.memory_space<vmem>>, %arg7: memref<1x128x256xbf16, #tpu.memory_space<vmem>>, %arg8: memref<1x256x128xbf16, #tpu.memory_space<vmem>>) attributes {dimension_semantics = [#tpu.dimension_semantics<parallel>, #tpu.dimension_semantics<parallel>], iteration_bounds = array<i64: 2, 1>, scalar_prefetch = 0 : i64, scratch_operands = 0 : i64, tpu.core_type = #tpu.core_type<tc>, window_params = [{transform_indices = @transform_0, window_bounds = array<i64: 1, 256, 128>}, {pipeline_mode = #tpu.pipeline_mode<synchronous>, transform_indices = @transform_1, window_bounds = array<i64: 1, 128>}, {pipeline_mode = #tpu.pipeline_mode<synchronous>, transform_indices = @transform_2, window_bounds = array<i64: 1, 128>}, {pipeline_mode = #tpu.pipeline_mode<synchronous>, transform_indices = @transform_3, window_bounds = array<i64: 128, 256>}, {pipeline_mode = #tpu.pipeline_mode<synchronous>, transform_indices = @transform_4, window_bounds = array<i64: 1, 256>}, {transform_indices = @transform_5, window_bounds = array<i64: 1, 128, 256>}, {transform_indices = @transform_6, window_bounds = array<i64: 1, 256, 128>}]} {
    %c0 = arith.constant 0 : index
    %c0_0 = arith.constant 0 : index
    %c0_1 = arith.constant 0 : index
    %0 = vector.load %arg2[%c0, %c0_0, %c0_1] : memref<1x256x128xf32, #tpu.memory_space<vmem>>, vector<1x256x128xf32>
    %1 = vector.shape_cast %0 : vector<1x256x128xf32> to vector<256x128xf32>
    %c0_2 = arith.constant 0 : index
    %c0_3 = arith.constant 0 : index
    %2 = vector.load %arg3[%c0_2, %c0_3] : memref<1x128xf32, #tpu.memory_space<vmem>>, vector<1x128xf32>
    %3 = vector.shape_cast %2 : vector<1x128xf32> to vector<128xf32>
    %c0_4 = arith.constant 0 : index
    %c0_5 = arith.constant 0 : index
    %4 = vector.load %arg4[%c0_4, %c0_5] : memref<1x128xf32, #tpu.memory_space<vmem>>, vector<1x128xf32>
    %5 = vector.shape_cast %4 : vector<1x128xf32> to vector<128xf32>
    %cst = arith.constant dense<0.000000e+00> : vector<256xf32>
    %6 = vector.multi_reduction <add>, %1, %cst [1] : vector<256x128xf32> to vector<256xf32>
    %7 = vector.shape_cast %6 : vector<256xf32> to vector<256x1xf32>
    %cst_6 = arith.constant 1.280000e+02 : f32
    %8 = vector.broadcast %cst_6 : f32 to vector<256x1xf32>
    %9 = arith.divf %7, %8 : vector<256x1xf32>
    %10 = vector.broadcast %9 : vector<256x1xf32> to vector<256x128xf32>
    %11 = arith.subf %1, %10 : vector<256x128xf32>
    %12 = arith.mulf %11, %11 : vector<256x128xf32>
    %cst_7 = arith.constant dense<0.000000e+00> : vector<256xf32>
    %13 = vector.multi_reduction <add>, %12, %cst_7 [1] : vector<256x128xf32> to vector<256xf32>
    %14 = vector.shape_cast %13 : vector<256xf32> to vector<256x1xf32>
    %cst_8 = arith.constant 1.280000e+02 : f32
    %15 = vector.broadcast %cst_8 : f32 to vector<256x1xf32>
    %16 = arith.divf %14, %15 : vector<256x1xf32>
    %cst_9 = arith.constant 9.99999974E-6 : f32
    %17 = vector.broadcast %cst_9 : f32 to vector<256x1xf32>
    %18 = arith.addf %16, %17 : vector<256x1xf32>
    %19 = math.rsqrt %18 : vector<256x1xf32>
    %20 = vector.broadcast %19 : vector<256x1xf32> to vector<256x128xf32>
    %21 = arith.mulf %11, %20 : vector<256x128xf32>
    %22 = vector.shape_cast %3 : vector<128xf32> to vector<1x128xf32>
    %23 = vector.broadcast %22 : vector<1x128xf32> to vector<256x128xf32>
    %24 = arith.mulf %21, %23 : vector<256x128xf32>
    %25 = vector.shape_cast %5 : vector<128xf32> to vector<1x128xf32>
    %26 = vector.broadcast %25 : vector<1x128xf32> to vector<256x128xf32>
    %27 = arith.addf %24, %26 : vector<256x128xf32>
    %28 = arith.truncf %27 : vector<256x128xf32> to vector<256x128xbf16>
    %c0_10 = arith.constant 0 : index
    %c0_11 = arith.constant 0 : index
    %29 = vector.load %arg5[%c0_10, %c0_11] : memref<128x256xbf16, #tpu.memory_space<vmem>>, vector<128x256xbf16>
    %cst_12 = arith.constant dense<0.000000e+00> : vector<256x256xf32>
    %30 = tpu.matmul %28, %29, %cst_12 {dimension_numbers = #tpu.dot_dimension_numbers<[1], [0], [0], [1], [0, 0, 1, 1], [], []>} : vector<256x128xbf16>, vector<128x256xbf16>, vector<256x256xf32> -> vector<256x256xf32>
    %c0_13 = arith.constant 0 : index
    %c0_14 = arith.constant 0 : index
    %31 = vector.load %arg6[%c0_13, %c0_14] : memref<1x256xf32, #tpu.memory_space<vmem>>, vector<1x256xf32>
    %32 = vector.shape_cast %31 : vector<1x256xf32> to vector<256xf32>
    %33 = vector.shape_cast %32 : vector<256xf32> to vector<1x256xf32>
    %34 = vector.broadcast %33 : vector<1x256xf32> to vector<256x256xf32>
    %35 = arith.addf %30, %34 : vector<256x256xf32>
    %36 = vector.extract_strided_slice %35 {offsets = [0, 128], sizes = [256, 128], strides = [1, 1]} : vector<256x256xf32> to vector<256x128xf32>
    %37 = arith.truncf %36 : vector<256x128xf32> to vector<256x128xbf16>
    %c0_15 = arith.constant 0 : index
    %c0_16 = arith.constant 0 : index
    %c0_17 = arith.constant 0 : index
    %38 = vector.load %arg8[%c0_15, %c0_16, %c0_17] : memref<1x256x128xbf16, #tpu.memory_space<vmem>>, vector<1x256x128xbf16>
    %39 = vector.shape_cast %38 : vector<1x256x128xbf16> to vector<256x128xbf16>
    %40 = vector.shape_cast %37 : vector<256x128xbf16> to vector<1x256x128xbf16>
    tpu.vector_store %arg8[%c0_15, %c0_16, %c0_17], %40 {strides = array<i32>} : memref<1x256x128xbf16, #tpu.memory_space<vmem>>, vector<1x256x128xbf16>,
    %41 = vector.extract_strided_slice %35 {offsets = [0, 0], sizes = [256, 128], strides = [1, 1]} : vector<256x256xf32> to vector<256x128xf32>
    %42 = tpu.transpose %41, [1, 0] : vector<256x128xf32> -> vector<128x256xf32>
    %43 = arith.truncf %42 : vector<128x256xf32> to vector<128x256xbf16>
    %c0_18 = arith.constant 0 : index
    %c0_19 = arith.constant 0 : index
    %c0_20 = arith.constant 0 : index
    %44 = vector.load %arg7[%c0_18, %c0_19, %c0_20] : memref<1x128x256xbf16, #tpu.memory_space<vmem>>, vector<1x128x256xbf16>
    %45 = vector.shape_cast %44 : vector<1x128x256xbf16> to vector<128x256xbf16>
    %46 = vector.shape_cast %43 : vector<128x256xbf16> to vector<1x128x256xbf16>
    tpu.vector_store %arg7[%c0_18, %c0_19, %c0_20], %46 {strides = array<i32>} : memref<1x128x256xbf16, #tpu.memory_space<vmem>>, vector<1x128x256xbf16>,
    return
  }
  func.func @transform_0(%arg0: i32, %arg1: i32) -> (i32, i32, i32) {
    %c0_i32 = arith.constant 0 : i32
    %c0_i32_0 = arith.constant 0 : i32
    return %arg0, %arg1, %c0_i32 : i32, i32, i32
  }
  func.func @transform_1(%arg0: i32, %arg1: i32) -> (i32, i32) {
    %c0_i32 = arith.constant 0 : i32
    %c0_i32_0 = arith.constant 0 : i32
    %c0_i32_1 = arith.constant 0 : i32
    return %c0_i32, %c0_i32_0 : i32, i32
  }
  func.func @transform_2(%arg0: i32, %arg1: i32) -> (i32, i32) {
    %c0_i32 = arith.constant 0 : i32
    %c0_i32_0 = arith.constant 0 : i32
    %c0_i32_1 = arith.constant 0 : i32
    return %c0_i32, %c0_i32_0 : i32, i32
  }
  func.func @transform_3(%arg0: i32, %arg1: i32) -> (i32, i32) {
    %c0_i32 = arith.constant 0 : i32
    %c0_i32_0 = arith.constant 0 : i32
    %c0_i32_1 = arith.constant 0 : i32
    return %c0_i32, %c0_i32_0 : i32, i32
  }
  func.func @transform_4(%arg0: i32, %arg1: i32) -> (i32, i32) {
    %c0_i32 = arith.constant 0 : i32
    %c0_i32_0 = arith.constant 0 : i32
    %c0_i32_1 = arith.constant 0 : i32
    return %c0_i32, %c0_i32_0 : i32, i32
  }
  func.func @transform_5(%arg0: i32, %arg1: i32) -> (i32, i32, i32) {
    %c0_i32 = arith.constant 0 : i32
    %c0_i32_0 = arith.constant 0 : i32
    return %arg0, %c0_i32, %arg1 : i32, i32, i32
  }
  func.func @transform_6(%arg0: i32, %arg1: i32) -> (i32, i32, i32) {
    %c0_i32 = arith.constant 0 : i32
    %c0_i32_0 = arith.constant 0 : i32
    return %arg0, %arg1, %c0_i32 : i32, i32, i32
  }
}

</mosaic_0001>

<llo_original>
// kernel: tpu_custom_call.1
$region0: #{tpu_custom_call.1}
  #allocation0 [shape = 'u32[]', space=smem, size = 0x4, offset = 0x4, fixed_abs, tag = 'smem constant byte address 0x4 - core index']
  #allocation1 [shape = 'u32[72,128]{1,0:T(1,128)}', space=vmem, size = 0x9000, scoped, tag = 'internal scratch']
  %s0 = inlined_call_operand.hbm [shape: f32[2,256,128], index: 0, kind: input, shape index: {}]
  %s1 = inlined_call_operand.hbm [shape: f32[1,128], index: 1, kind: input, shape index: {}]
  %s2 = inlined_call_operand.vmem [shape: f32[1,128], index: 2, kind: input, shape index: {}]
  %s3 = inlined_call_operand.hbm [shape: bf16[128,256], index: 3, kind: input, shape index: {}]
  %s4 = inlined_call_operand.vmem [shape: f32[1,256], index: 4, kind: input, shape index: {}]
  %s5 = inlined_call_operand.hbm [shape: bf16[2,128,256], index: 5, kind: output, shape index: {0}]
  %s6 = inlined_call_operand.hbm [shape: bf16[2,256,128], index: 6, kind: output, shape index: {1}]
  %7 = xla_tuple %s5, %s6
  %s8 = sld [smem:[#allocation0]]
  $region73: #{tpu_custom_call.1} parent=0
    _
  %s10 = ssub.s32 1, %s8
  %s11 = scalar_select 0, %s10, %s8
  $region1: #{tpu_custom_call.1} parent=0
    #allocation2 [shape = 'u8[262144]{0}', space=vmem, size = 0x40000, scoped, tag = 'input window, operand 0']
    #allocation3 [shape = 's32[2]{0}', space=sflag, size = 0x8, scoped, tag = 'scoped memory for tpu_custom_call.1']
    #allocation4 [shape = 's32[2]{0}', space=sflag, size = 0x8, scoped, tag = 'scoped memory for tpu_custom_call.1']
    #allocation5 [shape = 'u8[512]{0}', space=vmem, size = 0x400, scoped, tag = 'input window, operand 1, single buffered']
    #allocation6 [shape = 's32[1]{0}', space=sflag, size = 0x4, scoped, tag = 'scoped memory for tpu_custom_call.1']
    #allocation7 [shape = 'u8[65536]{0}', space=vmem, size = 0x10000, scoped, tag = 'input window, operand 3, single buffered']
    #allocation8 [shape = 'u8[131072]{0}', space=vmem, size = 0x20000, scoped, tag = 'output window, operand 0']
    #allocation9 [shape = 'u8[131072]{0}', space=vmem, size = 0x20000, scoped, tag = 'output window, operand 1']
    #allocation10 [shape = 's32[2]{0}', space=sflag, size = 0x8, scoped, tag = 'scoped memory for tpu_custom_call.1']
    %12 = vsyncpa [#allocation3], 0
    %s13 = scalar_lea.sflag [#allocation3], 1
    %14 = vsyncpa %s13, 0
    %15 = vsyncpa [#allocation6], 0
    %16 = vsyncpa [#allocation4], 0
    %s17 = scalar_lea.sflag [#allocation4], 1
    %18 = vsyncpa %s17, 0
    %19 = vsyncpa [#allocation10], 0
    %s20 = scalar_lea.sflag [#allocation10], 1
    %21 = vsyncpa %s20, 0
    loop: start=0, step=1, limit=4
    $region2: #{tpu_custom_call.1} parent=1 // loop_pre_header
      _
    $region3: #{tpu_custom_call.1} parent=1 // loop_header
      %s23 = sphi 0, %s27
      %p24 = scmp.ge.s32.totalorder %s23, 4
      %s30 = sphi 0, %s42
      %s31 = sphi 0, %s38
      %s32 = sphi 0, %s30
      %s33 = sphi 0, %s31
      %s34 = sphi 0, %s32
      %s35 = sphi 0, %s33
      %s47 = sphi 0, %s49
      %s50 = sphi 0, %s47
      %s51 = sphi 0, %s50
      %s67 = sphi 0, %s51
      %s71 = sphi 0, %s71
      %s73 = sphi 0, %s71
      %s74 = sphi 0, %s73
      %s88 = sphi 0, %s74
      %s92 = sphi 0, %s92
      %s94 = sphi 0, %s92
      %s95 = sphi 0, %s94
      %s109 = sphi 0, %s95
      %s113 = sphi 0, %s113
      %s115 = sphi 0, %s113
      %s116 = sphi 0, %s115
      %s130 = sphi 0, %s116
      %s134 = sphi 0, %s134
      %s136 = sphi 0, %s134
      %s137 = sphi 0, %s136
      %s151 = sphi 0, %s137
      %s159 = sphi 0, %s161
      %s162 = sphi 0, %s159
      %s163 = sphi 0, %s162
      %s179 = sphi 0, %s163
      %s187 = sphi 0, %s189
      %s190 = sphi 0, %s187
      %s191 = sphi 0, %s190
      %s207 = sphi 0, %s191
    $region4: #{tpu_custom_call.1} parent=1 // loop_header_branch
      %26 = sbr.rel (%p24) target = $region8
    $region5: #{tpu_custom_call.1} parent=1 // loop_body
      %s28 = ssub.s32 %s23, 1
      %s29 = ssub.s32 %s23, 2
      %s36 = sadd.s32 1, %s31
      %p37 = scmp.ge.s32.totalorder %s36, 1
      %s38 = scalar_select %p37, 0, %s36
      %s39 = sadd.s32 1, %s30
      %s40 = scalar_select %p37, %s39, %s30
      %p41 = scmp.ge.s32.totalorder %s40, 2
      %s42 = scalar_select %p41, 0, %s40
      %s43 = ssub.s32 %s30, %s42
      %s44 = ssub.s32 %s31, %s38
      %s45 = sor.u32 %s43, %s44
      %p46 = scmp.eq.s32.totalorder %s45, 0
      %s48 = sadd.s32 %s47, 1
      %s49 = scalar_select %p46, %s47, %s48
      %p52 = pneg %p46
      %p53 = scmp.eq.s32.totalorder %s23, 1
      %p54 = por %p52, %p53
      %p55 = scmp.ne.s32.totalorder %s47, %s50
      %p56 = scmp.eq.s32.totalorder %s23, 0
      %p57 = por %p55, %p56
      %p58 = scmp.ne.s32.totalorder %s47, %s50
      %p59 = scmp.eq.s32.totalorder %s28, 1
      %p60 = por %p58, %p59
      %p61 = scmp.ne.s32.totalorder %s50, %s51
      %p62 = scmp.eq.s32.totalorder %s28, 0
      %p63 = por %p61, %p62
      %p64 = scmp.ne.s32.totalorder %s50, %s51
      %p65 = scmp.eq.s32.totalorder %s29, 1
      %p66 = por %p64, %p65
      %p68 = scmp.ne.s32.totalorder %s51, %s67
      %p69 = scmp.eq.s32.totalorder %s29, 0
      %p70 = por %p68, %p69
      %s72 = sadd.s32 %s71, 1
      %p75 = scmp.eq.s32.totalorder %s23, 1
      %p76 = scmp.ne.s32.totalorder %s71, %s73
      %p77 = scmp.eq.s32.totalorder %s23, 0
      %p78 = por %p76, %p77
      %p79 = scmp.ne.s32.totalorder %s71, %s73
      %p80 = scmp.eq.s32.totalorder %s28, 1
      %p81 = por %p79, %p80
      %p82 = scmp.ne.s32.totalorder %s73, %s74
      %p83 = scmp.eq.s32.totalorder %s28, 0
      %p84 = por %p82, %p83
      %p85 = scmp.ne.s32.totalorder %s73, %s74
      %p86 = scmp.eq.s32.totalorder %s29, 1
      %p87 = por %p85, %p86
      %p89 = scmp.ne.s32.totalorder %s74, %s88
      %p90 = scmp.eq.s32.totalorder %s29, 0
      %p91 = por %p89, %p90
      %s93 = sadd.s32 %s92, 1
      %p96 = scmp.eq.s32.totalorder %s23, 1
      %p97 = scmp.ne.s32.totalorder %s92, %s94
      %p98 = scmp.eq.s32.totalorder %s23, 0
      %p99 = por %p97, %p98
      %p100 = scmp.ne.s32.totalorder %s92, %s94
      %p101 = scmp.eq.s32.totalorder %s28, 1
      %p102 = por %p100, %p101
      %p103 = scmp.ne.s32.totalorder %s94, %s95
      %p104 = scmp.eq.s32.totalorder %s28, 0
      %p105 = por %p103, %p104
      %p106 = scmp.ne.s32.totalorder %s94, %s95
      %p107 = scmp.eq.s32.totalorder %s29, 1
      %p108 = por %p106, %p107
      %p110 = scmp.ne.s32.totalorder %s95, %s109
      %p111 = scmp.eq.s32.totalorder %s29, 0
      %p112 = por %p110, %p111
      %s114 = sadd.s32 %s113, 1
      %p117 = scmp.eq.s32.totalorder %s23, 1
      %p118 = scmp.ne.s32.totalorder %s113, %s115
      %p119 = scmp.eq.s32.totalorder %s23, 0
      %p120 = por %p118, %p119
      %p121 = scmp.ne.s32.totalorder %s113, %s115
      %p122 = scmp.eq.s32.totalorder %s28, 1
      %p123 = por %p121, %p122
      %p124 = scmp.ne.s32.totalorder %s115, %s116
      %p125 = scmp.eq.s32.totalorder %s28, 0
      %p126 = por %p124, %p125
      %p127 = scmp.ne.s32.totalorder %s115, %s116
      %p128 = scmp.eq.s32.totalorder %s29, 1
      %p129 = por %p127, %p128
      %p131 = scmp.ne.s32.totalorder %s116, %s130
      %p132 = scmp.eq.s32.totalorder %s29, 0
      %p133 = por %p131, %p132
      %s135 = sadd.s32 %s134, 1
      %p138 = scmp.eq.s32.totalorder %s23, 1
      %p139 = scmp.ne.s32.totalorder %s134, %s136
      %p140 = scmp.eq.s32.totalorder %s23, 0
      %p141 = por %p139, %p140
      %p142 = scmp.ne.s32.totalorder %s134, %s136
      %p143 = scmp.eq.s32.totalorder %s28, 1
      %p144 = por %p142, %p143
      %p145 = scmp.ne.s32.totalorder %s136, %s137
      %p146 = scmp.eq.s32.totalorder %s28, 0
      %p147 = por %p145, %p146
      %p148 = scmp.ne.s32.totalorder %s136, %s137
      %p149 = scmp.eq.s32.totalorder %s29, 1
      %p150 = por %p148, %p149
      %p152 = scmp.ne.s32.totalorder %s137, %s151
      %p153 = scmp.eq.s32.totalorder %s29, 0
      %p154 = por %p152, %p153
      %s155 = ssub.s32 %s30, %s42
      %s156 = ssub.s32 %s31, %s38
      %s157 = sor.u32 %s155, %s156
      %p158 = scmp.eq.s32.totalorder %s157, 0
      %s160 = sadd.s32 %s159, 1
      %s161 = scalar_select %p158, %s159, %s160
      %p164 = pneg %p158
      %p165 = scmp.eq.s32.totalorder %s23, 1
      %p166 = por %p164, %p165
      %p167 = scmp.ne.s32.totalorder %s159, %s162
      %p168 = scmp.eq.s32.totalorder %s23, 0
      %p169 = por %p167, %p168
      %p170 = scmp.ne.s32.totalorder %s159, %s162
      %p171 = scmp.eq.s32.totalorder %s28, 1
      %p172 = por %p170, %p171
      %p173 = scmp.ne.s32.totalorder %s162, %s163
      %p174 = scmp.eq.s32.totalorder %s28, 0
      %p175 = por %p173, %p174
      %p176 = scmp.ne.s32.totalorder %s162, %s163
      %p177 = scmp.eq.s32.totalorder %s29, 1
      %p178 = por %p176, %p177
      %p180 = scmp.ne.s32.totalorder %s163, %s179
      %p181 = scmp.eq.s32.totalorder %s29, 0
      %p182 = por %p180, %p181
      %s183 = ssub.s32 %s30, %s42
      %s184 = ssub.s32 %s31, %s38
      %s185 = sor.u32 %s183, %s184
      %p186 = scmp.eq.s32.totalorder %s185, 0
      %s188 = sadd.s32 %s187, 1
      %s189 = scalar_select %p186, %s187, %s188
      %p192 = pneg %p186
      %p193 = scmp.eq.s32.totalorder %s23, 1
      %p194 = por %p192, %p193
      %p195 = scmp.ne.s32.totalorder %s187, %s190
      %p196 = scmp.eq.s32.totalorder %s23, 0
      %p197 = por %p195, %p196
      %p198 = scmp.ne.s32.totalorder %s187, %s190
      %p199 = scmp.eq.s32.totalorder %s28, 1
      %p200 = por %p198, %p199
      %p201 = scmp.ne.s32.totalorder %s190, %s191
      %p202 = scmp.eq.s32.totalorder %s28, 0
      %p203 = por %p201, %p202
      %p204 = scmp.ne.s32.totalorder %s190, %s191
      %p205 = scmp.eq.s32.totalorder %s29, 1
      %p206 = por %p204, %p205
      %p208 = scmp.ne.s32.totalorder %s191, %s207
      %p209 = scmp.eq.s32.totalorder %s29, 0
      %p210 = por %p208, %p209
      %p211 = scmp.le.s32.totalorder 1, %s23
      %p212 = scmp.lt.s32.totalorder %s23, 3
      %p213 = pnand %p211, %p212
      %p214 = pneg %p213
      // Predicated region
      $region9: #{tpu_custom_call.1} parent=5 // pred_check
        _
      $region10: #{tpu_custom_call.1} parent=5 // pred_check_branch
        %216 = sbr.rel (%p213) target = $region12
      $region11: #{tpu_custom_call.1} parent=5 // pred_region
        %s217 = ssub.s32 %s23, 1
        // Predicated region
        $region13: #{tpu_custom_call.1} parent=11 // pred_check
          %p218 = pneg %p84
        $region14: #{tpu_custom_call.1} parent=11 // pred_check_branch
          %220 = sbr.rel (%p218) target = $region16
        $region15: #{tpu_custom_call.1} parent=11 // pred_region
          %222 = vsyncadd [#allocation6], 0
          %s224 = sshll.u32 %s1, 4
          %s225 = int_to_ptr.hbm [resolvable:$true] %s224
          %s226 = sshll.u32 [#allocation5], 4
          %s227 = int_to_ptr.vmem [resolvable:$true] %s226
          %229 = dma.hbm_to_vmem [thread:$0]  %s225, 16, %s227, [#allocation6]
        $region16: #{tpu_custom_call.1} parent=11 // pred_fallthru
          _
        // Predicated region
        $region17: #{tpu_custom_call.1} parent=11 // pred_check
          %p230 = pneg %p105
        $region18: #{tpu_custom_call.1} parent=11 // pred_check_branch
          %232 = sbr.rel (%p230) target = $region20
        $region19: #{tpu_custom_call.1} parent=11 // pred_region
          _
        $region20: #{tpu_custom_call.1} parent=11 // pred_fallthru
          _
        // Predicated region
        $region21: #{tpu_custom_call.1} parent=11 // pred_check
          %p233 = pneg %p126
        $region22: #{tpu_custom_call.1} parent=11 // pred_check_branch
          %235 = sbr.rel (%p233) target = $region24
        $region23: #{tpu_custom_call.1} parent=11 // pred_region
          %237 = vsyncadd [#allocation6], 0
          %s238 = sshll.u32 %s3, 4
          %s239 = int_to_ptr.hbm [resolvable:$true] %s238
          %s240 = sshll.u32 [#allocation7], 4
          %s241 = int_to_ptr.vmem [resolvable:$true] %s240
          %246 = dma.hbm_to_vmem [thread:$0]  %s239, 2048, %s241, [#allocation6], 128, 128, 8
        $region24: #{tpu_custom_call.1} parent=11 // pred_fallthru
          _
        // Predicated region
        $region25: #{tpu_custom_call.1} parent=11 // pred_check
          %p247 = pneg %p147
        $region26: #{tpu_custom_call.1} parent=11 // pred_check_branch
          %249 = sbr.rel (%p247) target = $region28
        $region27: #{tpu_custom_call.1} parent=11 // pred_region
          _
        $region28: #{tpu_custom_call.1} parent=11 // pred_fallthru
          _
      $region12: #{tpu_custom_call.1} parent=5 // pred_fallthru
        _
      %p250 = scmp.lt.s32.totalorder %s23, 2
      // Predicated region
      $region29: #{tpu_custom_call.1} parent=5 // pred_check
        %p251 = pneg %p250
      $region30: #{tpu_custom_call.1} parent=5 // pred_check_branch
        %253 = sbr.rel (%p251) target = $region32
      $region31: #{tpu_custom_call.1} parent=5 // pred_region
        // Predicated region
        $region33: #{tpu_custom_call.1} parent=31 // pred_check
          %p254 = pneg %p57
        $region34: #{tpu_custom_call.1} parent=31 // pred_check_branch
          %256 = sbr.rel (%p254) target = $region36
        $region35: #{tpu_custom_call.1} parent=31 // pred_region
          %s257 = sand.u32 %s47, 1
          %s258 = scalar_lea.sflag [#allocation3], %s257
          %s259 = sand.u32 %s47, 1
          %s260 = smul.addr %s259, 256
          %s261 = scalar_lea.vmem [#allocation2], %s260
          %s262 = smul.u32 32, %s31
          %264 = vsyncadd %s258, 0
          %s265 = smul.addr %s30, 32
          %s266 = sadd.s32 %s262, %s265
          %s267 = smul.addr %s266, 8
          %s268 = scalar_lea.hbm %s0, %s267
          %s269 = sshll.u32 %s268, 4
          %s270 = int_to_ptr.hbm [resolvable:$true] %s269
          %s271 = sshll.u32 %s261, 4
          %s272 = int_to_ptr.vmem [resolvable:$true] %s271
          %277 = dma.hbm_to_vmem [thread:$0]  %s270, 4096, %s272, %s258, 128, 128, 8
        $region36: #{tpu_custom_call.1} parent=31 // pred_fallthru
          _
      $region32: #{tpu_custom_call.1} parent=5 // pred_fallthru
        _
      %p278 = scmp.le.s32.totalorder 1, %s23
      %p279 = scmp.lt.s32.totalorder %s23, 3
      %p280 = pnand %p278, %p279
      %p281 = pneg %p280
      // Predicated region
      $region37: #{tpu_custom_call.1} parent=5 // pred_check
        _
      $region38: #{tpu_custom_call.1} parent=5 // pred_check_branch
        %283 = sbr.rel (%p280) target = $region40
      $region39: #{tpu_custom_call.1} parent=5 // pred_region
        %s284 = ssub.s32 %s23, 1
        %s285 = sand.u32 %s50, 1
        %s286 = scalar_lea.sflag [#allocation3], %s285
        %s287 = sand.u32 %s50, 1
        %s288 = smul.addr %s287, 256
        %s289 = scalar_lea.vmem [#allocation2], %s288
        // Predicated region
        $region41: #{tpu_custom_call.1} parent=39 // pred_check
          %p290 = pneg %p63
        $region42: #{tpu_custom_call.1} parent=39 // pred_check_branch
          %292 = sbr.rel (%p290) target = $region44
        $region43: #{tpu_custom_call.1} parent=39 // pred_region
          %294 = dma.done %s286, 4096
        $region44: #{tpu_custom_call.1} parent=39 // pred_fallthru
          _
        // Predicated region
        $region45: #{tpu_custom_call.1} parent=39 // pred_check
          %p295 = pneg %p84
        $region46: #{tpu_custom_call.1} parent=39 // pred_check_branch
          %297 = sbr.rel (%p295) target = $region48
        $region47: #{tpu_custom_call.1} parent=39 // pred_region
          %299 = dma.done [#allocation6], 16
        $region48: #{tpu_custom_call.1} parent=39 // pred_fallthru
          _
        // Predicated region
        $region49: #{tpu_custom_call.1} parent=39 // pred_check
          %p300 = pneg %p126
        $region50: #{tpu_custom_call.1} parent=39 // pred_check_branch
          %302 = sbr.rel (%p300) target = $region52
        $region51: #{tpu_custom_call.1} parent=39 // pred_region
          %304 = dma.done [#allocation6], 2048
        $region52: #{tpu_custom_call.1} parent=39 // pred_fallthru
          _
        %s305 = sand.u32 %s50, 1
        %s306 = scalar_lea.sflag [#allocation3], %s305
        %s307 = sand.u32 %s50, 1
        %s308 = smul.addr %s307, 256
        %s309 = scalar_lea.vmem [#allocation2], %s308
        %p310 = pneg %p63
        %p311 = pneg %p60
        %p312 = pneg %p84
        %p313 = pneg %p81
        %p314 = pneg %p105
        %p315 = pneg %p102
        %p316 = pneg %p126
        %p317 = pneg %p123
        %p318 = pneg %p147
        %p319 = pneg %p144
        %p320 = pneg %p175
        %p321 = pneg %p172
        %s322 = sand.u32 %s162, 1
        %s323 = scalar_lea.sflag [#allocation4], %s322
        %s324 = sand.u32 %s162, 1
        %s325 = smul.addr %s324, 128
        %s326 = scalar_lea.vmem [#allocation8], %s325
        %p327 = pneg %p203
        %p328 = pneg %p200
        %s329 = sand.u32 %s190, 1
        %s330 = scalar_lea.sflag [#allocation10], %s329
        %s331 = sand.u32 %s190, 1
        %s332 = smul.addr %s331, 128
        %s333 = scalar_lea.vmem [#allocation9], %s332
        %s334 = smul.u32 32, %s33
        %s335 = smul.u32 2, %s33
        %s336 = smul.u32 32, %s33
        %v337 = vld [vmem:[%s289] sm:$0xff]
        %v338 = vld [vmem:[%s289 + $0x8] sm:$0xff]
        %v339 = vld [vmem:[%s289 + $0x10] sm:$0xff]
        %v340 = vld [vmem:[%s289 + $0x18] sm:$0xff]
        %v341 = vld [vmem:[%s289 + $0x20] sm:$0xff]
        %v342 = vld [vmem:[%s289 + $0x28] sm:$0xff]
        %v343 = vld [vmem:[%s289 + $0x30] sm:$0xff]
        %v344 = vld [vmem:[%s289 + $0x38] sm:$0xff]
        %v345 = vld [vmem:[%s289 + $0x40] sm:$0xff]
        %v346 = vld [vmem:[%s289 + $0x48] sm:$0xff]
        %v347 = vld [vmem:[%s289 + $0x50] sm:$0xff]
        %v348 = vld [vmem:[%s289 + $0x58] sm:$0xff]
        %v349 = vld [vmem:[%s289 + $0x60] sm:$0xff]
        %v350 = vld [vmem:[%s289 + $0x68] sm:$0xff]
        %v351 = vld [vmem:[%s289 + $0x70] sm:$0xff]
        %v352 = vld [vmem:[%s289 + $0x78] sm:$0xff]
        %v353 = vld [vmem:[%s289 + $0x80] sm:$0xff]
        %v354 = vld [vmem:[%s289 + $0x88] sm:$0xff]
        %v355 = vld [vmem:[%s289 + $0x90] sm:$0xff]
        %v356 = vld [vmem:[%s289 + $0x98] sm:$0xff]
        %v357 = vld [vmem:[%s289 + $0xa0] sm:$0xff]
        %v358 = vld [vmem:[%s289 + $0xa8] sm:$0xff]
        %v359 = vld [vmem:[%s289 + $0xb0] sm:$0xff]
        %v360 = vld [vmem:[%s289 + $0xb8] sm:$0xff]
        %v361 = vld [vmem:[%s289 + $0xc0] sm:$0xff]
        %v362 = vld [vmem:[%s289 + $0xc8] sm:$0xff]
        %v363 = vld [vmem:[%s289 + $0xd0] sm:$0xff]
        %v364 = vld [vmem:[%s289 + $0xd8] sm:$0xff]
        %v365 = vld [vmem:[%s289 + $0xe0] sm:$0xff]
        %v366 = vld [vmem:[%s289 + $0xe8] sm:$0xff]
        %v367 = vld [vmem:[%s289 + $0xf0] sm:$0xff]
        %v368 = vld [vmem:[%s289 + $0xf8] sm:$0xff]
        %v369 = vld [vmem:[#allocation5] sm:$0x1]
        %v370 = vld [vmem:[%s2] sm:$0x1]
        %371 = vadd.xlane.f32.xlu0 %v337
        %v372 = vpop.xlane.xlu0 %371
        %373 = vadd.xlane.f32.xlu0 %v338
        %v374 = vpop.xlane.xlu0 %373
        %375 = vadd.xlane.f32.xlu0 %v339
        %v376 = vpop.xlane.xlu0 %375
        %377 = vadd.xlane.f32.xlu0 %v340
        %v378 = vpop.xlane.xlu0 %377
        %379 = vadd.xlane.f32.xlu0 %v341
        %v380 = vpop.xlane.xlu0 %379
        %381 = vadd.xlane.f32.xlu0 %v342
        %v382 = vpop.xlane.xlu0 %381
        %383 = vadd.xlane.f32.xlu0 %v343
        %v384 = vpop.xlane.xlu0 %383
        %385 = vadd.xlane.f32.xlu0 %v344
        %v386 = vpop.xlane.xlu0 %385
        %387 = vadd.xlane.f32.xlu0 %v345
        %v388 = vpop.xlane.xlu0 %387
        %389 = vadd.xlane.f32.xlu0 %v346
        %v390 = vpop.xlane.xlu0 %389
        %391 = vadd.xlane.f32.xlu0 %v347
        %v392 = vpop.xlane.xlu0 %391
        %393 = vadd.xlane.f32.xlu0 %v348
        %v394 = vpop.xlane.xlu0 %393
        %395 = vadd.xlane.f32.xlu0 %v349
        %v396 = vpop.xlane.xlu0 %395
        %397 = vadd.xlane.f32.xlu0 %v350
        %v398 = vpop.xlane.xlu0 %397
        %399 = vadd.xlane.f32.xlu0 %v351
        %v400 = vpop.xlane.xlu0 %399
        %401 = vadd.xlane.f32.xlu0 %v352
        %v402 = vpop.xlane.xlu0 %401
        %403 = vadd.xlane.f32.xlu0 %v353
        %v404 = vpop.xlane.xlu0 %403
        %405 = vadd.xlane.f32.xlu0 %v354
        %v406 = vpop.xlane.xlu0 %405
        %407 = vadd.xlane.f32.xlu0 %v355
        %v408 = vpop.xlane.xlu0 %407
        %409 = vadd.xlane.f32.xlu0 %v356
        %v410 = vpop.xlane.xlu0 %409
        %411 = vadd.xlane.f32.xlu0 %v357
        %v412 = vpop.xlane.xlu0 %411
        %413 = vadd.xlane.f32.xlu0 %v358
        %v414 = vpop.xlane.xlu0 %413
        %415 = vadd.xlane.f32.xlu0 %v359
        %v416 = vpop.xlane.xlu0 %415
        %417 = vadd.xlane.f32.xlu0 %v360
        %v418 = vpop.xlane.xlu0 %417
        %419 = vadd.xlane.f32.xlu0 %v361
        %v420 = vpop.xlane.xlu0 %419
        %421 = vadd.xlane.f32.xlu0 %v362
        %v422 = vpop.xlane.xlu0 %421
        %423 = vadd.xlane.f32.xlu0 %v363
        %v424 = vpop.xlane.xlu0 %423
        %425 = vadd.xlane.f32.xlu0 %v364
        %v426 = vpop.xlane.xlu0 %425
        %427 = vadd.xlane.f32.xlu0 %v365
        %v428 = vpop.xlane.xlu0 %427
        %429 = vadd.xlane.f32.xlu0 %v366
        %v430 = vpop.xlane.xlu0 %429
        %431 = vadd.xlane.f32.xlu0 %v367
        %v432 = vpop.xlane.xlu0 %431
        %433 = vadd.xlane.f32.xlu0 %v368
        %v434 = vpop.xlane.xlu0 %433
        %v435 = vrcp.pop 128.0
        %v436 = vmul.f32 128.0, %v435
        %v437 = vsub.f32 1.0, %v436
        %v438 = vmul.f32 %v435, %v437
        %v439 = vadd.f32 %v435, %v438
        %vm440 = vweird.f32 %v435
        %v441 = vsel %vm440, %v435, %v439
        %v442 = vmul.f32 %v372, %v441
        %v443 = vmul.f32 %v374, %v441
        %v444 = vmul.f32 %v376, %v441
        %v445 = vmul.f32 %v378, %v441
        %v446 = vmul.f32 %v380, %v441
        %v447 = vmul.f32 %v382, %v441
        %v448 = vmul.f32 %v384, %v441
        %v449 = vmul.f32 %v386, %v441
        %v450 = vmul.f32 %v388, %v441
        %v451 = vmul.f32 %v390, %v441
        %v452 = vmul.f32 %v392, %v441
        %v453 = vmul.f32 %v394, %v441
        %v454 = vmul.f32 %v396, %v441
        %v455 = vmul.f32 %v398, %v441
        %v456 = vmul.f32 %v400, %v441
        %v457 = vmul.f32 %v402, %v441
        %v458 = vmul.f32 %v404, %v441
        %v459 = vmul.f32 %v406, %v441
        %v460 = vmul.f32 %v408, %v441
        %v461 = vmul.f32 %v410, %v441
        %v462 = vmul.f32 %v412, %v441
        %v463 = vmul.f32 %v414, %v441
        %v464 = vmul.f32 %v416, %v441
        %v465 = vmul.f32 %v418, %v441
        %v466 = vmul.f32 %v420, %v441
        %v467 = vmul.f32 %v422, %v441
        %v468 = vmul.f32 %v424, %v441
        %v469 = vmul.f32 %v426, %v441
        %v470 = vmul.f32 %v428, %v441
        %v471 = vmul.f32 %v430, %v441
        %v472 = vmul.f32 %v432, %v441
        %v473 = vmul.f32 %v434, %v441
        %v474 = vsub.f32 %v337, %v442
        %v475 = vsub.f32 %v338, %v443
        %v476 = vsub.f32 %v339, %v444
        %v477 = vsub.f32 %v340, %v445
        %v478 = vsub.f32 %v341, %v446
        %v479 = vsub.f32 %v342, %v447
        %v480 = vsub.f32 %v343, %v448
        %v481 = vsub.f32 %v344, %v449
        %v482 = vsub.f32 %v345, %v450
        %v483 = vsub.f32 %v346, %v451
        %v484 = vsub.f32 %v347, %v452
        %v485 = vsub.f32 %v348, %v453
        %v486 = vsub.f32 %v349, %v454
        %v487 = vsub.f32 %v350, %v455
        %v488 = vsub.f32 %v351, %v456
        %v489 = vsub.f32 %v352, %v457
        %v490 = vsub.f32 %v353, %v458
        %v491 = vsub.f32 %v354, %v459
        %v492 = vsub.f32 %v355, %v460
        %v493 = vsub.f32 %v356, %v461
        %v494 = vsub.f32 %v357, %v462
        %v495 = vsub.f32 %v358, %v463
        %v496 = vsub.f32 %v359, %v464
        %v497 = vsub.f32 %v360, %v465
        %v498 = vsub.f32 %v361, %v466
        %v499 = vsub.f32 %v362, %v467
        %v500 = vsub.f32 %v363, %v468
        %v501 = vsub.f32 %v364, %v469
        %v502 = vsub.f32 %v365, %v470
        %v503 = vsub.f32 %v366, %v471
        %v504 = vsub.f32 %v367, %v472
        %v505 = vsub.f32 %v368, %v473
        %v506 = vmul.f32 %v474, %v474
        %v507 = vmul.f32 %v475, %v475
        %v508 = vmul.f32 %v476, %v476
        %v509 = vmul.f32 %v477, %v477
        %v510 = vmul.f32 %v478, %v478
        %v511 = vmul.f32 %v479, %v479
        %v512 = vmul.f32 %v480, %v480
        %v513 = vmul.f32 %v481, %v481
        %v514 = vmul.f32 %v482, %v482
        %v515 = vmul.f32 %v483, %v483
        %v516 = vmul.f32 %v484, %v484
        %v517 = vmul.f32 %v485, %v485
        %v518 = vmul.f32 %v486, %v486
        %v519 = vmul.f32 %v487, %v487
        %v520 = vmul.f32 %v488, %v488
        %v521 = vmul.f32 %v489, %v489
        %v522 = vmul.f32 %v490, %v490
        %v523 = vmul.f32 %v491, %v491
        %v524 = vmul.f32 %v492, %v492
        %v525 = vmul.f32 %v493, %v493
        %v526 = vmul.f32 %v494, %v494
        %v527 = vmul.f32 %v495, %v495
        %v528 = vmul.f32 %v496, %v496
        %v529 = vmul.f32 %v497, %v497
        %v530 = vmul.f32 %v498, %v498
        %v531 = vmul.f32 %v499, %v499
        %v532 = vmul.f32 %v500, %v500
        %v533 = vmul.f32 %v501, %v501
        %v534 = vmul.f32 %v502, %v502
        %v535 = vmul.f32 %v503, %v503
        %v536 = vmul.f32 %v504, %v504
        %v537 = vmul.f32 %v505, %v505
        %538 = vadd.xlane.f32.xlu0 %v506
        %v539 = vpop.xlane.xlu0 %538
        %540 = vadd.xlane.f32.xlu0 %v507
        %v541 = vpop.xlane.xlu0 %540
        %542 = vadd.xlane.f32.xlu0 %v508
        %v543 = vpop.xlane.xlu0 %542
        %544 = vadd.xlane.f32.xlu0 %v509
        %v545 = vpop.xlane.xlu0 %544
        %546 = vadd.xlane.f32.xlu0 %v510
        %v547 = vpop.xlane.xlu0 %546
        %548 = vadd.xlane.f32.xlu0 %v511
        %v549 = vpop.xlane.xlu0 %548
        %550 = vadd.xlane.f32.xlu0 %v512
        %v551 = vpop.xlane.xlu0 %550
        %552 = vadd.xlane.f32.xlu0 %v513
        %v553 = vpop.xlane.xlu0 %552
        %554 = vadd.xlane.f32.xlu0 %v514
        %v555 = vpop.xlane.xlu0 %554
        %556 = vadd.xlane.f32.xlu0 %v515
        %v557 = vpop.xlane.xlu0 %556
        %558 = vadd.xlane.f32.xlu0 %v516
        %v559 = vpop.xlane.xlu0 %558
        %560 = vadd.xlane.f32.xlu0 %v517
        %v561 = vpop.xlane.xlu0 %560
        %562 = vadd.xlane.f32.xlu0 %v518
        %v563 = vpop.xlane.xlu0 %562
        %564 = vadd.xlane.f32.xlu0 %v519
        %v565 = vpop.xlane.xlu0 %564
        %566 = vadd.xlane.f32.xlu0 %v520
        %v567 = vpop.xlane.xlu0 %566
        %568 = vadd.xlane.f32.xlu0 %v521
        %v569 = vpop.xlane.xlu0 %568
        %570 = vadd.xlane.f32.xlu0 %v522
        %v571 = vpop.xlane.xlu0 %570
        %572 = vadd.xlane.f32.xlu0 %v523
        %v573 = vpop.xlane.xlu0 %572
        %574 = vadd.xlane.f32.xlu0 %v524
        %v575 = vpop.xlane.xlu0 %574
        %576 = vadd.xlane.f32.xlu0 %v525
        %v577 = vpop.xlane.xlu0 %576
        %578 = vadd.xlane.f32.xlu0 %v526
        %v579 = vpop.xlane.xlu0 %578
        %580 = vadd.xlane.f32.xlu0 %v527
        %v581 = vpop.xlane.xlu0 %580
        %582 = vadd.xlane.f32.xlu0 %v528
        %v583 = vpop.xlane.xlu0 %582
        %584 = vadd.xlane.f32.xlu0 %v529
        %v585 = vpop.xlane.xlu0 %584
        %586 = vadd.xlane.f32.xlu0 %v530
        %v587 = vpop.xlane.xlu0 %586
        %588 = vadd.xlane.f32.xlu0 %v531
        %v589 = vpop.xlane.xlu0 %588
        %590 = vadd.xlane.f32.xlu0 %v532
        %v591 = vpop.xlane.xlu0 %590
        %592 = vadd.xlane.f32.xlu0 %v533
        %v593 = vpop.xlane.xlu0 %592
        %594 = vadd.xlane.f32.xlu0 %v534
        %v595 = vpop.xlane.xlu0 %594
        %596 = vadd.xlane.f32.xlu0 %v535
        %v597 = vpop.xlane.xlu0 %596
        %598 = vadd.xlane.f32.xlu0 %v536
        %v599 = vpop.xlane.xlu0 %598
        %600 = vadd.xlane.f32.xlu0 %v537
        %v601 = vpop.xlane.xlu0 %600
        %v602 = vmul.f32 %v539, %v441
        %v603 = vmul.f32 %v541, %v441
        %v604 = vmul.f32 %v543, %v441
        %v605 = vmul.f32 %v545, %v441
        %v606 = vmul.f32 %v547, %v441
        %v607 = vmul.f32 %v549, %v441
        %v608 = vmul.f32 %v551, %v441
        %v609 = vmul.f32 %v553, %v441
        %v610 = vmul.f32 %v555, %v441
        %v611 = vmul.f32 %v557, %v441
        %v612 = vmul.f32 %v559, %v441
        %v613 = vmul.f32 %v561, %v441
        %v614 = vmul.f32 %v563, %v441
        %v615 = vmul.f32 %v565, %v441
        %v616 = vmul.f32 %v567, %v441
        %v617 = vmul.f32 %v569, %v441
        %v618 = vmul.f32 %v571, %v441
        %v619 = vmul.f32 %v573, %v441
        %v620 = vmul.f32 %v575, %v441
        %v621 = vmul.f32 %v577, %v441
        %v622 = vmul.f32 %v579, %v441
        %v623 = vmul.f32 %v581, %v441
        %v624 = vmul.f32 %v583, %v441
        %v625 = vmul.f32 %v585, %v441
        %v626 = vmul.f32 %v587, %v441
        %v627 = vmul.f32 %v589, %v441
        %v628 = vmul.f32 %v591, %v441
        %v629 = vmul.f32 %v593, %v441
        %v630 = vmul.f32 %v595, %v441
        %v631 = vmul.f32 %v597, %v441
        %v632 = vmul.f32 %v599, %v441
        %v633 = vmul.f32 %v601, %v441
        %v634 = vadd.f32 %v602, 1e-05
        %v635 = vadd.f32 %v603, 1e-05
        %v636 = vadd.f32 %v604, 1e-05
        %v637 = vadd.f32 %v605, 1e-05
        %v638 = vadd.f32 %v606, 1e-05
        %v639 = vadd.f32 %v607, 1e-05
        %v640 = vadd.f32 %v608, 1e-05
        %v641 = vadd.f32 %v609, 1e-05
        %v642 = vadd.f32 %v610, 1e-05
        %v643 = vadd.f32 %v611, 1e-05
        %v644 = vadd.f32 %v612, 1e-05
        %v645 = vadd.f32 %v613, 1e-05
        %v646 = vadd.f32 %v614, 1e-05
        %v647 = vadd.f32 %v615, 1e-05
        %v648 = vadd.f32 %v616, 1e-05
        %v649 = vadd.f32 %v617, 1e-05
        %v650 = vadd.f32 %v618, 1e-05
        %v651 = vadd.f32 %v619, 1e-05
        %v652 = vadd.f32 %v620, 1e-05
        %v653 = vadd.f32 %v621, 1e-05
        %v654 = vadd.f32 %v622, 1e-05
        %v655 = vadd.f32 %v623, 1e-05
        %v656 = vadd.f32 %v624, 1e-05
        %v657 = vadd.f32 %v625, 1e-05
        %v658 = vadd.f32 %v626, 1e-05
        %v659 = vadd.f32 %v627, 1e-05
        %v660 = vadd.f32 %v628, 1e-05
        %v661 = vadd.f32 %v629, 1e-05
        %v662 = vadd.f32 %v630, 1e-05
        %v663 = vadd.f32 %v631, 1e-05
        %v664 = vadd.f32 %v632, 1e-05
        %v665 = vadd.f32 %v633, 1e-05
        %v666 = vrsqrt.pop %v634
        %v667 = vmul.f32 %v666, %v634
        %v668 = vmul.f32 %v667, %v666
        %v669 = vmul.f32 0.5, %v668
        %v670 = vsub.f32 1.5, %v669
        %v671 = vmul.f32 %v666, %v670
        %vm672 = vweird.f32 %v634
        %vm673 = vweird.f32 %v666
        %vm674 = vmor %vm672, %vm673
        %v675 = vsel %vm674, %v666, %v671
        %v676 = vrsqrt.pop %v635
        %v677 = vmul.f32 %v676, %v635
        %v678 = vmul.f32 %v677, %v676
        %v679 = vmul.f32 0.5, %v678
        %v680 = vsub.f32 1.5, %v679
        %v681 = vmul.f32 %v676, %v680
        %vm682 = vweird.f32 %v635
        %vm683 = vweird.f32 %v676
        %vm684 = vmor %vm682, %vm683
        %v685 = vsel %vm684, %v676, %v681
        %v686 = vrsqrt.pop %v636
        %v687 = vmul.f32 %v686, %v636
        %v688 = vmul.f32 %v687, %v686
        %v689 = vmul.f32 0.5, %v688
        %v690 = vsub.f32 1.5, %v689
        %v691 = vmul.f32 %v686, %v690
        %vm692 = vweird.f32 %v636
        %vm693 = vweird.f32 %v686
        %vm694 = vmor %vm692, %vm693
        %v695 = vsel %vm694, %v686, %v691
        %v696 = vrsqrt.pop %v637
        %v697 = vmul.f32 %v696, %v637
        %v698 = vmul.f32 %v697, %v696
        %v699 = vmul.f32 0.5, %v698
        %v700 = vsub.f32 1.5, %v699
        %v701 = vmul.f32 %v696, %v700
        %vm702 = vweird.f32 %v637
        %vm703 = vweird.f32 %v696
        %vm704 = vmor %vm702, %vm703
        %v705 = vsel %vm704, %v696, %v701
        %v706 = vrsqrt.pop %v638
        %v707 = vmul.f32 %v706, %v638
        %v708 = vmul.f32 %v707, %v706
        %v709 = vmul.f32 0.5, %v708
        %v710 = vsub.f32 1.5, %v709
        %v711 = vmul.f32 %v706, %v710
        %vm712 = vweird.f32 %v638
        %vm713 = vweird.f32 %v706
        %vm714 = vmor %vm712, %vm713
        %v715 = vsel %vm714, %v706, %v711
        %v716 = vrsqrt.pop %v639
        %v717 = vmul.f32 %v716, %v639
        %v718 = vmul.f32 %v717, %v716
        %v719 = vmul.f32 0.5, %v718
        %v720 = vsub.f32 1.5, %v719
        %v721 = vmul.f32 %v716, %v720
        %vm722 = vweird.f32 %v639
        %vm723 = vweird.f32 %v716
        %vm724 = vmor %vm722, %vm723
        %v725 = vsel %vm724, %v716, %v721
        %v726 = vrsqrt.pop %v640
        %v727 = vmul.f32 %v726, %v640
        %v728 = vmul.f32 %v727, %v726
        %v729 = vmul.f32 0.5, %v728
        %v730 = vsub.f32 1.5, %v729
        %v731 = vmul.f32 %v726, %v730
        %vm732 = vweird.f32 %v640
        %vm733 = vweird.f32 %v726
        %vm734 = vmor %vm732, %vm733
        %v735 = vsel %vm734, %v726, %v731
        %v736 = vrsqrt.pop %v641
        %v737 = vmul.f32 %v736, %v641
        %v738 = vmul.f32 %v737, %v736
        %v739 = vmul.f32 0.5, %v738
        %v740 = vsub.f32 1.5, %v739
        %v741 = vmul.f32 %v736, %v740
        %vm742 = vweird.f32 %v641
        %vm743 = vweird.f32 %v736
        %vm744 = vmor %vm742, %vm743
        %v745 = vsel %vm744, %v736, %v741
        %v746 = vrsqrt.pop %v642
        %v747 = vmul.f32 %v746, %v642
        %v748 = vmul.f32 %v747, %v746
        %v749 = vmul.f32 0.5, %v748
        %v750 = vsub.f32 1.5, %v749
        %v751 = vmul.f32 %v746, %v750
        %vm752 = vweird.f32 %v642
        %vm753 = vweird.f32 %v746
        %vm754 = vmor %vm752, %vm753
        %v755 = vsel %vm754, %v746, %v751
        %v756 = vrsqrt.pop %v643
        %v757 = vmul.f32 %v756, %v643
        %v758 = vmul.f32 %v757, %v756
        %v759 = vmul.f32 0.5, %v758
        %v760 = vsub.f32 1.5, %v759
        %v761 = vmul.f32 %v756, %v760
        %vm762 = vweird.f32 %v643
        %vm763 = vweird.f32 %v756
        %vm764 = vmor %vm762, %vm763
        %v765 = vsel %vm764, %v756, %v761
        %v766 = vrsqrt.pop %v644
        %v767 = vmul.f32 %v766, %v644
        %v768 = vmul.f32 %v767, %v766
        %v769 = vmul.f32 0.5, %v768
        %v770 = vsub.f32 1.5, %v769
        %v771 = vmul.f32 %v766, %v770
        %vm772 = vweird.f32 %v644
        %vm773 = vweird.f32 %v766
        %vm774 = vmor %vm772, %vm773
        %v775 = vsel %vm774, %v766, %v771
        %v776 = vrsqrt.pop %v645
        %v777 = vmul.f32 %v776, %v645
        %v778 = vmul.f32 %v777, %v776
        %v779 = vmul.f32 0.5, %v778
        %v780 = vsub.f32 1.5, %v779
        %v781 = vmul.f32 %v776, %v780
        %vm782 = vweird.f32 %v645
        %vm783 = vweird.f32 %v776
        %vm784 = vmor %vm782, %vm783
        %v785 = vsel %vm784, %v776, %v781
        %v786 = vrsqrt.pop %v646
        %v787 = vmul.f32 %v786, %v646
        %v788 = vmul.f32 %v787, %v786
        %v789 = vmul.f32 0.5, %v788
        %v790 = vsub.f32 1.5, %v789
        %v791 = vmul.f32 %v786, %v790
        %vm792 = vweird.f32 %v646
        %vm793 = vweird.f32 %v786
        %vm794 = vmor %vm792, %vm793
        %v795 = vsel %vm794, %v786, %v791
        %v796 = vrsqrt.pop %v647
        %v797 = vmul.f32 %v796, %v647
        %v798 = vmul.f32 %v797, %v796
        %v799 = vmul.f32 0.5, %v798
        %v800 = vsub.f32 1.5, %v799
        %v801 = vmul.f32 %v796, %v800
        %vm802 = vweird.f32 %v647
        %vm803 = vweird.f32 %v796
        %vm804 = vmor %vm802, %vm803
        %v805 = vsel %vm804, %v796, %v801
        %v806 = vrsqrt.pop %v648
        %v807 = vmul.f32 %v806, %v648
        %v808 = vmul.f32 %v807, %v806
        %v809 = vmul.f32 0.5, %v808
        %v810 = vsub.f32 1.5, %v809
        %v811 = vmul.f32 %v806, %v810
        %vm812 = vweird.f32 %v648
        %vm813 = vweird.f32 %v806
        %vm814 = vmor %vm812, %vm813
        %v815 = vsel %vm814, %v806, %v811
        %v816 = vrsqrt.pop %v649
        %v817 = vmul.f32 %v816, %v649
        %v818 = vmul.f32 %v817, %v816
        %v819 = vmul.f32 0.5, %v818
        %v820 = vsub.f32 1.5, %v819
        %v821 = vmul.f32 %v816, %v820
        %vm822 = vweird.f32 %v649
        %vm823 = vweird.f32 %v816
        %vm824 = vmor %vm822, %vm823
        %v825 = vsel %vm824, %v816, %v821
        %v826 = vrsqrt.pop %v650
        %v827 = vmul.f32 %v826, %v650
        %v828 = vmul.f32 %v827, %v826
        %v829 = vmul.f32 0.5, %v828
        %v830 = vsub.f32 1.5, %v829
        %v831 = vmul.f32 %v826, %v830
        %vm832 = vweird.f32 %v650
        %vm833 = vweird.f32 %v826
        %vm834 = vmor %vm832, %vm833
        %v835 = vsel %vm834, %v826, %v831
        %v836 = vrsqrt.pop %v651
        %v837 = vmul.f32 %v836, %v651
        %v838 = vmul.f32 %v837, %v836
        %v839 = vmul.f32 0.5, %v838
        %v840 = vsub.f32 1.5, %v839
        %v841 = vmul.f32 %v836, %v840
        %vm842 = vweird.f32 %v651
        %vm843 = vweird.f32 %v836
        %vm844 = vmor %vm842, %vm843
        %v845 = vsel %vm844, %v836, %v841
        %v846 = vrsqrt.pop %v652
        %v847 = vmul.f32 %v846, %v652
        %v848 = vmul.f32 %v847, %v846
        %v849 = vmul.f32 0.5, %v848
        %v850 = vsub.f32 1.5, %v849
        %v851 = vmul.f32 %v846, %v850
        %vm852 = vweird.f32 %v652
        %vm853 = vweird.f32 %v846
        %vm854 = vmor %vm852, %vm853
        %v855 = vsel %vm854, %v846, %v851
        %v856 = vrsqrt.pop %v653
        %v857 = vmul.f32 %v856, %v653
        %v858 = vmul.f32 %v857, %v856
        %v859 = vmul.f32 0.5, %v858
        %v860 = vsub.f32 1.5, %v859
        %v861 = vmul.f32 %v856, %v860
        %vm862 = vweird.f32 %v653
        %vm863 = vweird.f32 %v856
        %vm864 = vmor %vm862, %vm863
        %v865 = vsel %vm864, %v856, %v861
        %v866 = vrsqrt.pop %v654
        %v867 = vmul.f32 %v866, %v654
        %v868 = vmul.f32 %v867, %v866
        %v869 = vmul.f32 0.5, %v868
        %v870 = vsub.f32 1.5, %v869
        %v871 = vmul.f32 %v866, %v870
        %vm872 = vweird.f32 %v654
        %vm873 = vweird.f32 %v866
        %vm874 = vmor %vm872, %vm873
        %v875 = vsel %vm874, %v866, %v871
        %v876 = vrsqrt.pop %v655
        %v877 = vmul.f32 %v876, %v655
        %v878 = vmul.f32 %v877, %v876
        %v879 = vmul.f32 0.5, %v878
        %v880 = vsub.f32 1.5, %v879
        %v881 = vmul.f32 %v876, %v880
        %vm882 = vweird.f32 %v655
        %vm883 = vweird.f32 %v876
        %vm884 = vmor %vm882, %vm883
        %v885 = vsel %vm884, %v876, %v881
        %v886 = vrsqrt.pop %v656
        %v887 = vmul.f32 %v886, %v656
        %v888 = vmul.f32 %v887, %v886
        %v889 = vmul.f32 0.5, %v888
        %v890 = vsub.f32 1.5, %v889
        %v891 = vmul.f32 %v886, %v890
        %vm892 = vweird.f32 %v656
        %vm893 = vweird.f32 %v886
        %vm894 = vmor %vm892, %vm893
        %v895 = vsel %vm894, %v886, %v891
        %v896 = vrsqrt.pop %v657
        %v897 = vmul.f32 %v896, %v657
        %v898 = vmul.f32 %v897, %v896
        %v899 = vmul.f32 0.5, %v898
        %v900 = vsub.f32 1.5, %v899
        %v901 = vmul.f32 %v896, %v900
        %vm902 = vweird.f32 %v657
        %vm903 = vweird.f32 %v896
        %vm904 = vmor %vm902, %vm903
        %v905 = vsel %vm904, %v896, %v901
        %v906 = vrsqrt.pop %v658
        %v907 = vmul.f32 %v906, %v658
        %v908 = vmul.f32 %v907, %v906
        %v909 = vmul.f32 0.5, %v908
        %v910 = vsub.f32 1.5, %v909
        %v911 = vmul.f32 %v906, %v910
        %vm912 = vweird.f32 %v658
        %vm913 = vweird.f32 %v906
        %vm914 = vmor %vm912, %vm913
        %v915 = vsel %vm914, %v906, %v911
        %v916 = vrsqrt.pop %v659
        %v917 = vmul.f32 %v916, %v659
        %v918 = vmul.f32 %v917, %v916
        %v919 = vmul.f32 0.5, %v918
        %v920 = vsub.f32 1.5, %v919
        %v921 = vmul.f32 %v916, %v920
        %vm922 = vweird.f32 %v659
        %vm923 = vweird.f32 %v916
        %vm924 = vmor %vm922, %vm923
        %v925 = vsel %vm924, %v916, %v921
        %v926 = vrsqrt.pop %v660
        %v927 = vmul.f32 %v926, %v660
        %v928 = vmul.f32 %v927, %v926
        %v929 = vmul.f32 0.5, %v928
        %v930 = vsub.f32 1.5, %v929
        %v931 = vmul.f32 %v926, %v930
        %vm932 = vweird.f32 %v660
        %vm933 = vweird.f32 %v926
        %vm934 = vmor %vm932, %vm933
        %v935 = vsel %vm934, %v926, %v931
        %v936 = vrsqrt.pop %v661
        %v937 = vmul.f32 %v936, %v661
        %v938 = vmul.f32 %v937, %v936
        %v939 = vmul.f32 0.5, %v938
        %v940 = vsub.f32 1.5, %v939
        %v941 = vmul.f32 %v936, %v940
        %vm942 = vweird.f32 %v661
        %vm943 = vweird.f32 %v936
        %vm944 = vmor %vm942, %vm943
        %v945 = vsel %vm944, %v936, %v941
        %v946 = vrsqrt.pop %v662
        %v947 = vmul.f32 %v946, %v662
        %v948 = vmul.f32 %v947, %v946
        %v949 = vmul.f32 0.5, %v948
        %v950 = vsub.f32 1.5, %v949
        %v951 = vmul.f32 %v946, %v950
        %vm952 = vweird.f32 %v662
        %vm953 = vweird.f32 %v946
        %vm954 = vmor %vm952, %vm953
        %v955 = vsel %vm954, %v946, %v951
        %v956 = vrsqrt.pop %v663
        %v957 = vmul.f32 %v956, %v663
        %v958 = vmul.f32 %v957, %v956
        %v959 = vmul.f32 0.5, %v958
        %v960 = vsub.f32 1.5, %v959
        %v961 = vmul.f32 %v956, %v960
        %vm962 = vweird.f32 %v663
        %vm963 = vweird.f32 %v956
        %vm964 = vmor %vm962, %vm963
        %v965 = vsel %vm964, %v956, %v961
        %v966 = vrsqrt.pop %v664
        %v967 = vmul.f32 %v966, %v664
        %v968 = vmul.f32 %v967, %v966
        %v969 = vmul.f32 0.5, %v968
        %v970 = vsub.f32 1.5, %v969
        %v971 = vmul.f32 %v966, %v970
        %vm972 = vweird.f32 %v664
        %vm973 = vweird.f32 %v966
        %vm974 = vmor %vm972, %vm973
        %v975 = vsel %vm974, %v966, %v971
        %v976 = vrsqrt.pop %v665
        %v977 = vmul.f32 %v976, %v665
        %v978 = vmul.f32 %v977, %v976
        %v979 = vmul.f32 0.5, %v978
        %v980 = vsub.f32 1.5, %v979
        %v981 = vmul.f32 %v976, %v980
        %vm982 = vweird.f32 %v665
        %vm983 = vweird.f32 %v976
        %vm984 = vmor %vm982, %vm983
        %v985 = vsel %vm984, %v976, %v981
        %v986 = vmul.f32 %v474, %v675
        %v987 = vmul.f32 %v475, %v685
        %v988 = vmul.f32 %v476, %v695
        %v989 = vmul.f32 %v477, %v705
        %v990 = vmul.f32 %v478, %v715
        %v991 = vmul.f32 %v479, %v725
        %v992 = vmul.f32 %v480, %v735
        %v993 = vmul.f32 %v481, %v745
        %v994 = vmul.f32 %v482, %v755
        %v995 = vmul.f32 %v483, %v765
        %v996 = vmul.f32 %v484, %v775
        %v997 = vmul.f32 %v485, %v785
        %v998 = vmul.f32 %v486, %v795
        %v999 = vmul.f32 %v487, %v805
        %v1000 = vmul.f32 %v488, %v815
        %v1001 = vmul.f32 %v489, %v825
        %v1002 = vmul.f32 %v490, %v835
        %v1003 = vmul.f32 %v491, %v845
        %v1004 = vmul.f32 %v492, %v855
        %v1005 = vmul.f32 %v493, %v865
        %v1006 = vmul.f32 %v494, %v875
        %v1007 = vmul.f32 %v495, %v885
        %v1008 = vmul.f32 %v496, %v895
        %v1009 = vmul.f32 %v497, %v905
        %v1010 = vmul.f32 %v498, %v915
        %v1011 = vmul.f32 %v499, %v925
        %v1012 = vmul.f32 %v500, %v935
        %v1013 = vmul.f32 %v501, %v945
        %v1014 = vmul.f32 %v502, %v955
        %v1015 = vmul.f32 %v503, %v965
        %v1016 = vmul.f32 %v504, %v975
        %v1017 = vmul.f32 %v505, %v985
        %v1019 = vperm.slane %v369, 0
        %v1021 = vmul.f32 %v986, %v1019
        %v1022 = vmul.f32 %v987, %v1019
        %v1023 = vmul.f32 %v988, %v1019
        %v1024 = vmul.f32 %v989, %v1019
        %v1025 = vmul.f32 %v990, %v1019
        %v1026 = vmul.f32 %v991, %v1019
        %v1027 = vmul.f32 %v992, %v1019
        %v1028 = vmul.f32 %v993, %v1019
        %v1029 = vmul.f32 %v994, %v1019
        %v1030 = vmul.f32 %v995, %v1019
        %v1031 = vmul.f32 %v996, %v1019
        %v1032 = vmul.f32 %v997, %v1019
        %v1033 = vmul.f32 %v998, %v1019
        %v1034 = vmul.f32 %v999, %v1019
        %v1035 = vmul.f32 %v1000, %v1019
        %v1036 = vmul.f32 %v1001, %v1019
        %v1037 = vmul.f32 %v1002, %v1019
        %v1038 = vmul.f32 %v1003, %v1019
        %v1039 = vmul.f32 %v1004, %v1019
        %v1040 = vmul.f32 %v1005, %v1019
        %v1041 = vmul.f32 %v1006, %v1019
        %v1042 = vmul.f32 %v1007, %v1019
        %v1043 = vmul.f32 %v1008, %v1019
        %v1044 = vmul.f32 %v1009, %v1019
        %v1045 = vmul.f32 %v1010, %v1019
        %v1046 = vmul.f32 %v1011, %v1019
        %v1047 = vmul.f32 %v1012, %v1019
        %v1048 = vmul.f32 %v1013, %v1019
        %v1049 = vmul.f32 %v1014, %v1019
        %v1050 = vmul.f32 %v1015, %v1019
        %v1051 = vmul.f32 %v1016, %v1019
        %v1052 = vmul.f32 %v1017, %v1019
        %v1054 = vperm.slane %v370, 0
        %v1056 = vadd.f32 %v1021, %v1054
        %v1057 = vadd.f32 %v1022, %v1054
        %v1058 = vadd.f32 %v1023, %v1054
        %v1059 = vadd.f32 %v1024, %v1054
        %v1060 = vadd.f32 %v1025, %v1054
        %v1061 = vadd.f32 %v1026, %v1054
        %v1062 = vadd.f32 %v1027, %v1054
        %v1063 = vadd.f32 %v1028, %v1054
        %v1064 = vadd.f32 %v1029, %v1054
        %v1065 = vadd.f32 %v1030, %v1054
        %v1066 = vadd.f32 %v1031, %v1054
        %v1067 = vadd.f32 %v1032, %v1054
        %v1068 = vadd.f32 %v1033, %v1054
        %v1069 = vadd.f32 %v1034, %v1054
        %v1070 = vadd.f32 %v1035, %v1054
        %v1071 = vadd.f32 %v1036, %v1054
        %v1072 = vadd.f32 %v1037, %v1054
        %v1073 = vadd.f32 %v1038, %v1054
        %v1074 = vadd.f32 %v1039, %v1054
        %v1075 = vadd.f32 %v1040, %v1054
        %v1076 = vadd.f32 %v1041, %v1054
        %v1077 = vadd.f32 %v1042, %v1054
        %v1078 = vadd.f32 %v1043, %v1054
        %v1079 = vadd.f32 %v1044, %v1054
        %v1080 = vadd.f32 %v1045, %v1054
        %v1081 = vadd.f32 %v1046, %v1054
        %v1082 = vadd.f32 %v1047, %v1054
        %v1083 = vadd.f32 %v1048, %v1054
        %v1084 = vadd.f32 %v1049, %v1054
        %v1085 = vadd.f32 %v1050, %v1054
        %v1086 = vadd.f32 %v1051, %v1054
        %v1087 = vadd.f32 %v1052, %v1054
        %v1088 = vpack.c.bf16 %v1057, %v1056
        %v1089 = vpack.c.bf16 %v1059, %v1058
        %v1090 = vpack.c.bf16 %v1061, %v1060
        %v1091 = vpack.c.bf16 %v1063, %v1062
        %v1092 = vpack.c.bf16 %v1065, %v1064
        %v1093 = vpack.c.bf16 %v1067, %v1066
        %v1094 = vpack.c.bf16 %v1069, %v1068
        %v1095 = vpack.c.bf16 %v1071, %v1070
        %v1096 = vpack.c.bf16 %v1073, %v1072
        %v1097 = vpack.c.bf16 %v1075, %v1074
        %v1098 = vpack.c.bf16 %v1077, %v1076
        %v1099 = vpack.c.bf16 %v1079, %v1078
        %v1100 = vpack.c.bf16 %v1081, %v1080
        %v1101 = vpack.c.bf16 %v1083, %v1082
        %v1102 = vpack.c.bf16 %v1085, %v1084
        %v1103 = vpack.c.bf16 %v1087, %v1086
        %v1104 = vld [vmem:[#allocation7] sm:$0xff]
        %v1105 = vld [vmem:[#allocation7 + $0x8] sm:$0xff]
        %v1106 = vld [vmem:[#allocation7 + $0x10] sm:$0xff]
        %v1107 = vld [vmem:[#allocation7 + $0x18] sm:$0xff]
        %v1108 = vld [vmem:[#allocation7 + $0x20] sm:$0xff]
        %v1109 = vld [vmem:[#allocation7 + $0x28] sm:$0xff]
        %v1110 = vld [vmem:[#allocation7 + $0x30] sm:$0xff]
        %v1111 = vld [vmem:[#allocation7 + $0x38] sm:$0xff]
        %v1112 = vld [vmem:[#allocation7 + $0x40] sm:$0xff]
        %v1113 = vld [vmem:[#allocation7 + $0x48] sm:$0xff]
        %v1114 = vld [vmem:[#allocation7 + $0x50] sm:$0xff]
        %v1115 = vld [vmem:[#allocation7 + $0x58] sm:$0xff]
        %v1116 = vld [vmem:[#allocation7 + $0x60] sm:$0xff]
        %v1117 = vld [vmem:[#allocation7 + $0x68] sm:$0xff]
        %v1118 = vld [vmem:[#allocation7 + $0x70] sm:$0xff]
        %v1119 = vld [vmem:[#allocation7 + $0x78] sm:$0xff]
        %v1120 = vld [vmem:[%s4] sm:$0x3]
        %v1122 = vperm.slane %v1120, 0
        %v1123 = vperm.slane %v1120, 1
        %v1142 = vunpack.c.l.b16 %v1104
        %v1143 = vunpack.c.h.b16 %v1104
        %v1144 = vunpack.c.l.b16 %v1105
        %v1145 = vunpack.c.h.b16 %v1105
        %v1146 = vunpack.c.l.b16 %v1106
        %v1147 = vunpack.c.h.b16 %v1106
        %v1148 = vunpack.c.l.b16 %v1107
        %v1149 = vunpack.c.h.b16 %v1107
        %v1150 = vunpack.c.l.b16 %v1108
        %v1151 = vunpack.c.h.b16 %v1108
        %v1152 = vunpack.c.l.b16 %v1109
        %v1153 = vunpack.c.h.b16 %v1109
        %v1154 = vunpack.c.l.b16 %v1110
        %v1155 = vunpack.c.h.b16 %v1110
        %v1156 = vunpack.c.l.b16 %v1111
        %v1157 = vunpack.c.h.b16 %v1111
        %v1158 = vunpack.c.l.b16 %v1112
        %v1159 = vunpack.c.h.b16 %v1112
        %v1160 = vunpack.c.l.b16 %v1113
        %v1161 = vunpack.c.h.b16 %v1113
        %v1162 = vunpack.c.l.b16 %v1114
        %v1163 = vunpack.c.h.b16 %v1114
        %v1164 = vunpack.c.l.b16 %v1115
        %v1165 = vunpack.c.h.b16 %v1115
        %v1166 = vunpack.c.l.b16 %v1116
        %v1167 = vunpack.c.h.b16 %v1116
        %v1168 = vunpack.c.l.b16 %v1117
        %v1169 = vunpack.c.h.b16 %v1117
        %v1170 = vunpack.c.l.b16 %v1118
        %v1171 = vunpack.c.h.b16 %v1118
        %v1172 = vunpack.c.l.b16 %v1119
        %v1173 = vunpack.c.h.b16 %v1119
        %v1174 = vpack.c.b16 %v1144, %v1142
        %v1175 = vpack.c.b16 %v1145, %v1143
        %v1176 = vpack.c.b16 %v1148, %v1146
        %v1177 = vpack.c.b16 %v1149, %v1147
        %v1178 = vpack.c.b16 %v1152, %v1150
        %v1179 = vpack.c.b16 %v1153, %v1151
        %v1180 = vpack.c.b16 %v1156, %v1154
        %v1181 = vpack.c.b16 %v1157, %v1155
        %v1182 = vpack.c.b16 %v1160, %v1158
        %v1183 = vpack.c.b16 %v1161, %v1159
        %v1184 = vpack.c.b16 %v1164, %v1162
        %v1185 = vpack.c.b16 %v1165, %v1163
        %v1186 = vpack.c.b16 %v1168, %v1166
        %v1187 = vpack.c.b16 %v1169, %v1167
        %v1188 = vpack.c.b16 %v1172, %v1170
        %v1189 = vpack.c.b16 %v1173, %v1171
        %1206 = vmatpush.bf16.msra.mxu0 %v1188
        %1207 = vmatpush.bf16.msra.mxu0 %v1186
        %1208 = vmatpush.bf16.msra.mxu0 %v1184
        %1209 = vmatpush.bf16.msra.mxu0 %v1182
        %1210 = vmatpush.bf16.msra.mxu0 %v1180
        %1211 = vmatpush.bf16.msra.mxu0 %v1178
        %1212 = vmatpush.bf16.msra.mxu0 %v1176
        %1213 = vmatpush.bf16.msra.mxu0 %v1174
        %1214 = vmatmul.bf16.gmra.mxu0 %v1088
        %v1215 = vpop.f32.mrf.mxu0
        %v1216 = vadd.f32 %v1122, %v1215
        %v1217 = vpop.f32.mrf.mxu0
        %v1218 = vadd.f32 %v1122, %v1217
        %1219 = vmatmul.bf16.gmra.mxu0 %v1089
        %v1220 = vpop.f32.mrf.mxu0
        %v1221 = vadd.f32 %v1122, %v1220
        %v1222 = vpop.f32.mrf.mxu0
        %v1223 = vadd.f32 %v1122, %v1222
        %1224 = vmatmul.bf16.gmra.mxu0 %v1090
        %v1225 = vpop.f32.mrf.mxu0
        %v1226 = vadd.f32 %v1122, %v1225
        %v1227 = vpop.f32.mrf.mxu0
        %v1228 = vadd.f32 %v1122, %v1227
        %1229 = vmatmul.bf16.gmra.mxu0 %v1091
        %v1230 = vpop.f32.mrf.mxu0
        %v1231 = vadd.f32 %v1122, %v1230
        %v1232 = vpop.f32.mrf.mxu0
        %v1233 = vadd.f32 %v1122, %v1232
        %1234 = vmatmul.bf16.gmra.mxu0 %v1092
        %v1235 = vpop.f32.mrf.mxu0
        %v1236 = vadd.f32 %v1122, %v1235
        %v1237 = vpop.f32.mrf.mxu0
        %v1238 = vadd.f32 %v1122, %v1237
        %1239 = vmatmul.bf16.gmra.mxu0 %v1093
        %v1240 = vpop.f32.mrf.mxu0
        %v1241 = vadd.f32 %v1122, %v1240
        %v1242 = vpop.f32.mrf.mxu0
        %v1243 = vadd.f32 %v1122, %v1242
        %1244 = vmatmul.bf16.gmra.mxu0 %v1094
        %v1245 = vpop.f32.mrf.mxu0
        %v1246 = vadd.f32 %v1122, %v1245
        %v1247 = vpop.f32.mrf.mxu0
        %v1248 = vadd.f32 %v1122, %v1247
        %1249 = vmatmul.bf16.gmra.mxu0 %v1095
        %v1250 = vpop.f32.mrf.mxu0
        %v1251 = vadd.f32 %v1122, %v1250
        %v1252 = vpop.f32.mrf.mxu0
        %v1253 = vadd.f32 %v1122, %v1252
        %1254 = vmatmul.bf16.gmra.mxu0 %v1096
        %v1255 = vpop.f32.mrf.mxu0
        %v1256 = vadd.f32 %v1122, %v1255
        %v1257 = vpop.f32.mrf.mxu0
        %v1258 = vadd.f32 %v1122, %v1257
        %1259 = vmatmul.bf16.gmra.mxu0 %v1097
        %v1260 = vpop.f32.mrf.mxu0
        %v1261 = vadd.f32 %v1122, %v1260
        %v1262 = vpop.f32.mrf.mxu0
        %v1263 = vadd.f32 %v1122, %v1262
        %1264 = vmatmul.bf16.gmra.mxu0 %v1098
        %v1265 = vpop.f32.mrf.mxu0
        %v1266 = vadd.f32 %v1122, %v1265
        %v1267 = vpop.f32.mrf.mxu0
        %v1268 = vadd.f32 %v1122, %v1267
        %1269 = vmatmul.bf16.gmra.mxu0 %v1099
        %v1270 = vpop.f32.mrf.mxu0
        %v1271 = vadd.f32 %v1122, %v1270
        %v1272 = vpop.f32.mrf.mxu0
        %v1273 = vadd.f32 %v1122, %v1272
        %1274 = vmatmul.bf16.gmra.mxu0 %v1100
        %v1275 = vpop.f32.mrf.mxu0
        %v1276 = vadd.f32 %v1122, %v1275
        %v1277 = vpop.f32.mrf.mxu0
        %v1278 = vadd.f32 %v1122, %v1277
        %1279 = vmatmul.bf16.gmra.mxu0 %v1101
        %v1280 = vpop.f32.mrf.mxu0
        %v1281 = vadd.f32 %v1122, %v1280
        %v1282 = vpop.f32.mrf.mxu0
        %v1283 = vadd.f32 %v1122, %v1282
        %1284 = vmatmul.bf16.gmra.mxu0 %v1102
        %v1285 = vpop.f32.mrf.mxu0
        %v1286 = vadd.f32 %v1122, %v1285
        %v1287 = vpop.f32.mrf.mxu0
        %v1288 = vadd.f32 %v1122, %v1287
        %1289 = vmatmul.bf16.gmra.mxu0 %v1103
        %v1290 = vpop.f32.mrf.mxu0
        %v1291 = vadd.f32 %v1122, %v1290
        %v1292 = vpop.f32.mrf.mxu0
        %v1293 = vadd.f32 %v1122, %v1292
        %1294 = vdwg.mxu0
        %1295 = vmatpush.bf16.msra.mxu0 %v1189
        %1296 = vmatpush.bf16.msra.mxu0 %v1187
        %1297 = vmatpush.bf16.msra.mxu0 %v1185
        %1298 = vmatpush.bf16.msra.mxu0 %v1183
        %1299 = vmatpush.bf16.msra.mxu0 %v1181
        %1300 = vmatpush.bf16.msra.mxu0 %v1179
        %1301 = vmatpush.bf16.msra.mxu0 %v1177
        %1302 = vmatpush.bf16.msra.mxu0 %v1175
        %1303 = vmatmul.bf16.gmra.mxu0 %v1088
        %v1304 = vpop.f32.mrf.mxu0
        %v1305 = vadd.f32 %v1123, %v1304
        %v1306 = vpop.f32.mrf.mxu0
        %v1307 = vadd.f32 %v1123, %v1306
        %1308 = vmatmul.bf16.gmra.mxu0 %v1089
        %v1309 = vpop.f32.mrf.mxu0
        %v1310 = vadd.f32 %v1123, %v1309
        %v1311 = vpop.f32.mrf.mxu0
        %v1312 = vadd.f32 %v1123, %v1311
        %1313 = vmatmul.bf16.gmra.mxu0 %v1090
        %v1314 = vpop.f32.mrf.mxu0
        %v1315 = vadd.f32 %v1123, %v1314
        %v1316 = vpop.f32.mrf.mxu0
        %v1317 = vadd.f32 %v1123, %v1316
        %1318 = vmatmul.bf16.gmra.mxu0 %v1091
        %v1319 = vpop.f32.mrf.mxu0
        %v1320 = vadd.f32 %v1123, %v1319
        %v1321 = vpop.f32.mrf.mxu0
        %v1322 = vadd.f32 %v1123, %v1321
        %1323 = vmatmul.bf16.gmra.mxu0 %v1092
        %v1324 = vpop.f32.mrf.mxu0
        %v1325 = vadd.f32 %v1123, %v1324
        %v1326 = vpop.f32.mrf.mxu0
        %v1327 = vadd.f32 %v1123, %v1326
        %1328 = vmatmul.bf16.gmra.mxu0 %v1093
        %v1329 = vpop.f32.mrf.mxu0
        %v1330 = vadd.f32 %v1123, %v1329
        %v1331 = vpop.f32.mrf.mxu0
        %v1332 = vadd.f32 %v1123, %v1331
        %1333 = vmatmul.bf16.gmra.mxu0 %v1094
        %v1334 = vpop.f32.mrf.mxu0
        %v1335 = vadd.f32 %v1123, %v1334
        %v1336 = vpop.f32.mrf.mxu0
        %v1337 = vadd.f32 %v1123, %v1336
        %1338 = vmatmul.bf16.gmra.mxu0 %v1095
        %v1339 = vpop.f32.mrf.mxu0
        %v1340 = vadd.f32 %v1123, %v1339
        %v1341 = vpop.f32.mrf.mxu0
        %v1342 = vadd.f32 %v1123, %v1341
        %1343 = vmatmul.bf16.gmra.mxu0 %v1096
        %v1344 = vpop.f32.mrf.mxu0
        %v1345 = vadd.f32 %v1123, %v1344
        %v1346 = vpop.f32.mrf.mxu0
        %v1347 = vadd.f32 %v1123, %v1346
        %1348 = vmatmul.bf16.gmra.mxu0 %v1097
        %v1349 = vpop.f32.mrf.mxu0
        %v1350 = vadd.f32 %v1123, %v1349
        %v1351 = vpop.f32.mrf.mxu0
        %v1352 = vadd.f32 %v1123, %v1351
        %1353 = vmatmul.bf16.gmra.mxu0 %v1098
        %v1354 = vpop.f32.mrf.mxu0
        %v1355 = vadd.f32 %v1123, %v1354
        %v1356 = vpop.f32.mrf.mxu0
        %v1357 = vadd.f32 %v1123, %v1356
        %1358 = vmatmul.bf16.gmra.mxu0 %v1099
        %v1359 = vpop.f32.mrf.mxu0
        %v1360 = vadd.f32 %v1123, %v1359
        %v1361 = vpop.f32.mrf.mxu0
        %v1362 = vadd.f32 %v1123, %v1361
        %1363 = vmatmul.bf16.gmra.mxu0 %v1100
        %v1364 = vpop.f32.mrf.mxu0
        %v1365 = vadd.f32 %v1123, %v1364
        %v1366 = vpop.f32.mrf.mxu0
        %v1367 = vadd.f32 %v1123, %v1366
        %1368 = vmatmul.bf16.gmra.mxu0 %v1101
        %v1369 = vpop.f32.mrf.mxu0
        %v1370 = vadd.f32 %v1123, %v1369
        %v1371 = vpop.f32.mrf.mxu0
        %v1372 = vadd.f32 %v1123, %v1371
        %1373 = vmatmul.bf16.gmra.mxu0 %v1102
        %v1374 = vpop.f32.mrf.mxu0
        %v1375 = vadd.f32 %v1123, %v1374
        %v1376 = vpop.f32.mrf.mxu0
        %v1377 = vadd.f32 %v1123, %v1376
        %1378 = vmatmul.bf16.gmra.mxu0 %v1103
        %v1379 = vpop.f32.mrf.mxu0
        %v1380 = vadd.f32 %v1123, %v1379
        %v1381 = vpop.f32.mrf.mxu0
        %v1382 = vadd.f32 %v1123, %v1381
        %1383 = vdwg.mxu0
        %v1384 = vpack.c.bf16 %v1305, %v1305
        %v1385 = vpack.c.bf16 %v1307, %v1307
        %v1386 = vpack.c.bf16 %v1310, %v1310
        %v1387 = vpack.c.bf16 %v1312, %v1312
        %v1388 = vpack.c.bf16 %v1315, %v1315
        %v1389 = vpack.c.bf16 %v1317, %v1317
        %v1390 = vpack.c.bf16 %v1320, %v1320
        %v1391 = vpack.c.bf16 %v1322, %v1322
        %v1392 = vpack.c.bf16 %v1325, %v1325
        %v1393 = vpack.c.bf16 %v1327, %v1327
        %v1394 = vpack.c.bf16 %v1330, %v1330
        %v1395 = vpack.c.bf16 %v1332, %v1332
        %v1396 = vpack.c.bf16 %v1335, %v1335
        %v1397 = vpack.c.bf16 %v1337, %v1337
        %v1398 = vpack.c.bf16 %v1340, %v1340
        %v1399 = vpack.c.bf16 %v1342, %v1342
        %v1400 = vpack.c.bf16 %v1345, %v1345
        %v1401 = vpack.c.bf16 %v1347, %v1347
        %v1402 = vpack.c.bf16 %v1350, %v1350
        %v1403 = vpack.c.bf16 %v1352, %v1352
        %v1404 = vpack.c.bf16 %v1355, %v1355
        %v1405 = vpack.c.bf16 %v1357, %v1357
        %v1406 = vpack.c.bf16 %v1360, %v1360
        %v1407 = vpack.c.bf16 %v1362, %v1362
        %v1408 = vpack.c.bf16 %v1365, %v1365
        %v1409 = vpack.c.bf16 %v1367, %v1367
        %v1410 = vpack.c.bf16 %v1370, %v1370
        %v1411 = vpack.c.bf16 %v1372, %v1372
        %v1412 = vpack.c.bf16 %v1375, %v1375
        %v1413 = vpack.c.bf16 %v1377, %v1377
        %v1414 = vpack.c.bf16 %v1380, %v1380
        %v1415 = vpack.c.bf16 %v1382, %v1382
        %1416 = vst [vmem:[%s333] sm:$0xf] %v1384
        %1417 = vst [vmem:[%s333 + $0x4] sm:$0xf] %v1385
        %1418 = vst [vmem:[%s333 + $0x8] sm:$0xf] %v1386
        %1419 = vst [vmem:[%s333 + $0xc] sm:$0xf] %v1387
        %1420 = vst [vmem:[%s333 + $0x10] sm:$0xf] %v1388
        %1421 = vst [vmem:[%s333 + $0x14] sm:$0xf] %v1389
        %1422 = vst [vmem:[%s333 + $0x18] sm:$0xf] %v1390
        %1423 = vst [vmem:[%s333 + $0x1c] sm:$0xf] %v1391
        %1424 = vst [vmem:[%s333 + $0x20] sm:$0xf] %v1392
        %1425 = vst [vmem:[%s333 + $0x24] sm:$0xf] %v1393
        %1426 = vst [vmem:[%s333 + $0x28] sm:$0xf] %v1394
        %1427 = vst [vmem:[%s333 + $0x2c] sm:$0xf] %v1395
        %1428 = vst [vmem:[%s333 + $0x30] sm:$0xf] %v1396
        %1429 = vst [vmem:[%s333 + $0x34] sm:$0xf] %v1397
        %1430 = vst [vmem:[%s333 + $0x38] sm:$0xf] %v1398
        %1431 = vst [vmem:[%s333 + $0x3c] sm:$0xf] %v1399
        %1432 = vst [vmem:[%s333 + $0x40] sm:$0xf] %v1400
        %1433 = vst [vmem:[%s333 + $0x44] sm:$0xf] %v1401
        %1434 = vst [vmem:[%s333 + $0x48] sm:$0xf] %v1402
        %1435 = vst [vmem:[%s333 + $0x4c] sm:$0xf] %v1403
        %1436 = vst [vmem:[%s333 + $0x50] sm:$0xf] %v1404
        %1437 = vst [vmem:[%s333 + $0x54] sm:$0xf] %v1405
        %1438 = vst [vmem:[%s333 + $0x58] sm:$0xf] %v1406
        %1439 = vst [vmem:[%s333 + $0x5c] sm:$0xf] %v1407
        %1440 = vst [vmem:[%s333 + $0x60] sm:$0xf] %v1408
        %1441 = vst [vmem:[%s333 + $0x64] sm:$0xf] %v1409
        %1442 = vst [vmem:[%s333 + $0x68] sm:$0xf] %v1410
        %1443 = vst [vmem:[%s333 + $0x6c] sm:$0xf] %v1411
        %1444 = vst [vmem:[%s333 + $0x70] sm:$0xf] %v1412
        %1445 = vst [vmem:[%s333 + $0x74] sm:$0xf] %v1413
        %1446 = vst [vmem:[%s333 + $0x78] sm:$0xf] %v1414
        %1447 = vst [vmem:[%s333 + $0x7c] sm:$0xf] %v1415
        %1448 = vxpose.xlu0.b32.start [1/16] %v1216, 128
        %1449 = vxpose.xlu0.b32.cont [2/16] %v1218, 128
        %1450 = vxpose.xlu0.b32.cont [3/16] %v1221, 128
        %1451 = vxpose.xlu0.b32.cont [4/16] %v1223, 128
        %1452 = vxpose.xlu0.b32.cont [5/16] %v1226, 128
        %1453 = vxpose.xlu0.b32.cont [6/16] %v1228, 128
        %1454 = vxpose.xlu0.b32.cont [7/16] %v1231, 128
        %1455 = vxpose.xlu0.b32.cont [8/16] %v1233, 128
        %1456 = vxpose.xlu0.b32.cont [9/16] %v1236, 128
        %1457 = vxpose.xlu0.b32.cont [10/16] %v1238, 128
        %1458 = vxpose.xlu0.b32.cont [11/16] %v1241, 128
        %1459 = vxpose.xlu0.b32.cont [12/16] %v1243, 128
        %1460 = vxpose.xlu0.b32.cont [13/16] %v1246, 128
        %1461 = vxpose.xlu0.b32.cont [14/16] %v1248, 128
        %1462 = vxpose.xlu0.b32.cont [15/16] %v1251, 128
        %1463 = vxpose.xlu0.b32.end [16/16] %v1253, 128
        %v1464 = vpop.trf.xlu0
        %v1465 = vpop.trf.xlu0
        %v1466 = vpop.trf.xlu0
        %v1467 = vpop.trf.xlu0
        %v1468 = vpop.trf.xlu0
        %v1469 = vpop.trf.xlu0
        %v1470 = vpop.trf.xlu0
        %v1471 = vpop.trf.xlu0
        %v1472 = vpop.trf.xlu0
        %v1473 = vpop.trf.xlu0
        %v1474 = vpop.trf.xlu0
        %v1475 = vpop.trf.xlu0
        %v1476 = vpop.trf.xlu0
        %v1477 = vpop.trf.xlu0
        %v1478 = vpop.trf.xlu0
        %v1479 = vpop.trf.xlu0
        %1480 = vxpose.xlu0.b32.start [1/16] %v1256, 128
        %1481 = vxpose.xlu0.b32.cont [2/16] %v1258, 128
        %1482 = vxpose.xlu0.b32.cont [3/16] %v1261, 128
        %1483 = vxpose.xlu0.b32.cont [4/16] %v1263, 128
        %1484 = vxpose.xlu0.b32.cont [5/16] %v1266, 128
        %1485 = vxpose.xlu0.b32.cont [6/16] %v1268, 128
        %1486 = vxpose.xlu0.b32.cont [7/16] %v1271, 128
        %1487 = vxpose.xlu0.b32.cont [8/16] %v1273, 128
        %1488 = vxpose.xlu0.b32.cont [9/16] %v1276, 128
        %1489 = vxpose.xlu0.b32.cont [10/16] %v1278, 128
        %1490 = vxpose.xlu0.b32.cont [11/16] %v1281, 128
        %1491 = vxpose.xlu0.b32.cont [12/16] %v1283, 128
        %1492 = vxpose.xlu0.b32.cont [13/16] %v1286, 128
        %1493 = vxpose.xlu0.b32.cont [14/16] %v1288, 128
        %1494 = vxpose.xlu0.b32.cont [15/16] %v1291, 128
        %1495 = vxpose.xlu0.b32.end [16/16] %v1293, 128
        %v1496 = vpop.trf.xlu0
        %v1497 = vpop.trf.xlu0
        %v1498 = vpop.trf.xlu0
        %v1499 = vpop.trf.xlu0
        %v1500 = vpop.trf.xlu0
        %v1501 = vpop.trf.xlu0
        %v1502 = vpop.trf.xlu0
        %v1503 = vpop.trf.xlu0
        %v1504 = vpop.trf.xlu0
        %v1505 = vpop.trf.xlu0
        %v1506 = vpop.trf.xlu0
        %v1507 = vpop.trf.xlu0
        %v1508 = vpop.trf.xlu0
        %v1509 = vpop.trf.xlu0
        %v1510 = vpop.trf.xlu0
        %v1511 = vpop.trf.xlu0
        %v1512 = vpack.c.bf16 %v1496, %v1464
        %v1513 = vpack.c.bf16 %v1497, %v1465
        %v1514 = vpack.c.bf16 %v1498, %v1466
        %v1515 = vpack.c.bf16 %v1499, %v1467
        %v1516 = vpack.c.bf16 %v1500, %v1468
        %v1517 = vpack.c.bf16 %v1501, %v1469
        %v1518 = vpack.c.bf16 %v1502, %v1470
        %v1519 = vpack.c.bf16 %v1503, %v1471
        %v1520 = vpack.c.bf16 %v1504, %v1472
        %v1521 = vpack.c.bf16 %v1505, %v1473
        %v1522 = vpack.c.bf16 %v1506, %v1474
        %v1523 = vpack.c.bf16 %v1507, %v1475
        %v1524 = vpack.c.bf16 %v1508, %v1476
        %v1525 = vpack.c.bf16 %v1509, %v1477
        %v1526 = vpack.c.bf16 %v1510, %v1478
        %v1527 = vpack.c.bf16 %v1511, %v1479
        %1528 = vst [vmem:[%s326] sm:$0xff] %v1512
        %1529 = vst [vmem:[%s326 + $0x8] sm:$0xff] %v1513
        %1530 = vst [vmem:[%s326 + $0x10] sm:$0xff] %v1514
        %1531 = vst [vmem:[%s326 + $0x18] sm:$0xff] %v1515
        %1532 = vst [vmem:[%s326 + $0x20] sm:$0xff] %v1516
        %1533 = vst [vmem:[%s326 + $0x28] sm:$0xff] %v1517
        %1534 = vst [vmem:[%s326 + $0x30] sm:$0xff] %v1518
        %1535 = vst [vmem:[%s326 + $0x38] sm:$0xff] %v1519
        %1536 = vst [vmem:[%s326 + $0x40] sm:$0xff] %v1520
        %1537 = vst [vmem:[%s326 + $0x48] sm:$0xff] %v1521
        %1538 = vst [vmem:[%s326 + $0x50] sm:$0xff] %v1522
        %1539 = vst [vmem:[%s326 + $0x58] sm:$0xff] %v1523
        %1540 = vst [vmem:[%s326 + $0x60] sm:$0xff] %v1524
        %1541 = vst [vmem:[%s326 + $0x68] sm:$0xff] %v1525
        %1542 = vst [vmem:[%s326 + $0x70] sm:$0xff] %v1526
        %1543 = vst [vmem:[%s326 + $0x78] sm:$0xff] %v1527
        %s1544 = sand.u32 %s162, 1
        %s1545 = scalar_lea.sflag [#allocation4], %s1544
        %s1546 = sand.u32 %s162, 1
        %s1547 = smul.addr %s1546, 128
        %s1548 = scalar_lea.vmem [#allocation8], %s1547
        %s1549 = sand.u32 %s190, 1
        %s1550 = scalar_lea.sflag [#allocation10], %s1549
        %s1551 = sand.u32 %s190, 1
        %s1552 = smul.addr %s1551, 128
        %s1553 = scalar_lea.vmem [#allocation9], %s1552
        // Predicated region
        $region53: #{tpu_custom_call.1} parent=39 // pred_check
          %p1554 = pneg %p172
        $region54: #{tpu_custom_call.1} parent=39 // pred_check_branch
          %1556 = sbr.rel (%p1554) target = $region56
        $region55: #{tpu_custom_call.1} parent=39 // pred_region
          %s1557 = smul.u32 2, %s33
          %1559 = vsyncadd %s1545, 0
          %s1560 = smul.addr %s32, 32
          %s1561 = sadd.s32 %s1557, %s1560
          %s1562 = smul.addr %s1561, 4
          %s1563 = scalar_lea.hbm %s5, %s1562
          %s1564 = sshll.u32 %s1548, 4
          %s1565 = int_to_ptr.vmem [resolvable:$true] %s1564
          %s1566 = sshll.u32 %s1563, 4
          %s1567 = int_to_ptr.hbm [resolvable:$true] %s1566
          %1572 = dma.vmem_to_hbm [thread:$0]  %s1565, 2048, %s1567, %s1545, 128, 128, 8
        $region56: #{tpu_custom_call.1} parent=39 // pred_fallthru
          _
        // Predicated region
        $region57: #{tpu_custom_call.1} parent=39 // pred_check
          %p1573 = pneg %p200
        $region58: #{tpu_custom_call.1} parent=39 // pred_check_branch
          %1575 = sbr.rel (%p1573) target = $region60
        $region59: #{tpu_custom_call.1} parent=39 // pred_region
          %s1576 = smul.u32 32, %s33
          %1578 = vsyncadd %s1550, 0
          %s1579 = smul.addr %s32, 32
          %s1580 = sadd.s32 %s1576, %s1579
          %s1581 = smul.addr %s1580, 4
          %s1582 = scalar_lea.hbm %s6, %s1581
          %s1583 = sshll.u32 %s1553, 4
          %s1584 = int_to_ptr.vmem [resolvable:$true] %s1583
          %s1585 = sshll.u32 %s1582, 4
          %s1586 = int_to_ptr.hbm [resolvable:$true] %s1585
          %1591 = dma.vmem_to_hbm [thread:$0]  %s1584, 2048, %s1586, %s1550, 64, 64, 4
        $region60: #{tpu_custom_call.1} parent=39 // pred_fallthru
          _
      $region40: #{tpu_custom_call.1} parent=5 // pred_fallthru
        _
      %p1592 = scmp.le.s32.totalorder 2, %s23
      // Predicated region
      $region61: #{tpu_custom_call.1} parent=5 // pred_check
        %p1593 = pneg %p1592
      $region62: #{tpu_custom_call.1} parent=5 // pred_check_branch
        %1595 = sbr.rel (%p1593) target = $region64
      $region63: #{tpu_custom_call.1} parent=5 // pred_region
        %s1596 = ssub.s32 %s23, 2
        // Predicated region
        $region65: #{tpu_custom_call.1} parent=63 // pred_check
          %p1597 = pneg %p178
        $region66: #{tpu_custom_call.1} parent=63 // pred_check_branch
          %1599 = sbr.rel (%p1597) target = $region68
        $region67: #{tpu_custom_call.1} parent=63 // pred_region
          %s1600 = sand.u32 %s163, 1
          %s1601 = scalar_lea.sflag [#allocation4], %s1600
          %s1602 = sand.u32 %s163, 1
          %s1603 = smul.addr %s1602, 128
          %s1604 = scalar_lea.vmem [#allocation8], %s1603
          %1606 = dma.done %s1601, 2048
        $region68: #{tpu_custom_call.1} parent=63 // pred_fallthru
          _
        // Predicated region
        $region69: #{tpu_custom_call.1} parent=63 // pred_check
          %p1607 = pneg %p206
        $region70: #{tpu_custom_call.1} parent=63 // pred_check_branch
          %1609 = sbr.rel (%p1607) target = $region72
        $region71: #{tpu_custom_call.1} parent=63 // pred_region
          %s1610 = sand.u32 %s191, 1
          %s1611 = scalar_lea.sflag [#allocation10], %s1610
          %s1612 = sand.u32 %s191, 1
          %s1613 = smul.addr %s1612, 128
          %s1614 = scalar_lea.vmem [#allocation9], %s1613
          %1616 = dma.done %s1611, 2048
        $region72: #{tpu_custom_call.1} parent=63 // pred_fallthru
          _
      $region64: #{tpu_custom_call.1} parent=5 // pred_fallthru
        _
    $region6: #{tpu_custom_call.1} parent=1 // loop_footer
      %s27 = sadd.s32 1, %s23
    $region7: #{tpu_custom_call.1} parent=1 // loop_footer_branch
      %22 = sbr.rel target = $region3
    $region8: #{tpu_custom_call.1} parent=1 // loop_exit
      _
    %1617 = vsyncpa [#allocation3], 1
    %s1618 = scalar_lea.sflag [#allocation3], 1
    %1619 = vsyncpa %s1618, 1
    %1620 = vsyncpa [#allocation6], 1
    %1621 = vsyncpa [#allocation4], 1
    %s1622 = scalar_lea.sflag [#allocation4], 1
    %1623 = vsyncpa %s1622, 1
    %1624 = vsyncpa [#allocation10], 1
    %s1625 = scalar_lea.sflag [#allocation10], 1
    %1626 = vsyncpa %s1625, 1

</llo_original>
